<compile_context>
chip_gen: v7x
topology: tpu7x:2x2x1
jax: 0.10.0
libtpu: 0.0.40
codegen_flags: <defaults>
</compile_context>

<pallas_src>
import numpy as np
import jax
import jax.numpy as jnp
from jax.experimental import pallas as pl
from jax.experimental.pallas import tpu as pltpu

NEG_SLOPE = 0.01                                  # PyTorch nn.LeakyReLU default
NEG_HALF_LOG_2PI = -0.5 * float(np.log(2.0 * np.pi))


def _leaky_relu(x):
    return jnp.where(x > 0, x, NEG_SLOPE * x)


def encoder_logprob_kernel(x_ref, w1_ref, b1_ref, w2_ref, b2_ref,
                           wlv_ref, blv_ref, eps_ref, logp_ref):
    """Fused MLP encoder -> log_var head -> diag-Gaussian log-prob (simplified)."""
    # bf16 operands into the MXU, f32 accumulation; elementwise math in f32.
    xb = x_ref[...].astype(jnp.bfloat16)
    h1 = jnp.dot(xb, w1_ref[...], preferred_element_type=jnp.float32) + b1_ref[...]
    h1 = _leaky_relu(h1).astype(jnp.bfloat16)
    h2 = jnp.dot(h1, w2_ref[...], preferred_element_type=jnp.float32) + b2_ref[...]
    h2 = _leaky_relu(h2).astype(jnp.bfloat16)

    # log_var head only: mu head is dead compute for type='log_prob' since
    # exp(-log_var)*(z - mu)^2 == eps^2 exactly (z = mu + exp(0.5*log_var)*eps).
    log_var = (jnp.dot(h2, wlv_ref[...], preferred_element_type=jnp.float32)
               + blv_ref[...])

    eps = eps_ref[...]
    logp = NEG_HALF_LOG_2PI - 0.5 * log_var - 0.5 * eps * eps
    logp_ref[...] = logp.astype(logp_ref.dtype)


def encoder_log_prob(x, params, eps, *, tb=256):
    """forward(x, type='log_prob') with externally supplied reparameterization noise."""
    B, D = x.shape
    L = eps.shape[1]
    M = params["w1"].shape[1]

    # Weights in bf16 (halves weight DMA + feeds MXU bf16 path); biases stay f32.
    w1 = params["w1"].astype(jnp.bfloat16)
    w2 = params["w2"].astype(jnp.bfloat16)
    wlv = params["w_lv"].astype(jnp.bfloat16)
    b1 = params["b1"].astype(jnp.float32)
    b2 = params["b2"].astype(jnp.float32)
    blv = params["b_lv"].astype(jnp.float32)

    TB = min(tb, B)
    nb = pl.cdiv(B, TB)
    Bp = nb * TB
    if Bp != B:
        x = jnp.pad(x, ((0, Bp - B), (0, 0)))
        eps = jnp.pad(eps, ((0, Bp - B), (0, 0)))

    out = pl.pallas_call(
        encoder_logprob_kernel,
        out_shape=jax.ShapeDtypeStruct((Bp, L), jnp.float32),
        grid=(nb,),
        in_specs=[
            pl.BlockSpec((TB, D), lambda i: (i, 0)),   # x: streamed per batch tile
            pl.BlockSpec((D, M), lambda i: (0, 0)),    # w1: VMEM-resident
            pl.BlockSpec((1, M), lambda i: (0, 0)),    # b1
            pl.BlockSpec((M, M), lambda i: (0, 0)),    # w2
            pl.BlockSpec((1, M), lambda i: (0, 0)),    # b2
            pl.BlockSpec((M, L), lambda i: (0, 0)),    # w_lv
            pl.BlockSpec((1, L), lambda i: (0, 0)),    # b_lv
            pl.BlockSpec((TB, L), lambda i: (i, 0)),   # eps: streamed per batch tile
        ],
        out_specs=pl.BlockSpec((TB, L), lambda i: (i, 0)),
        compiler_params=pltpu.CompilerParams(
            dimension_semantics=("parallel",)),        # megacore-shard batch on v7x
    )(x, w1, b1, w2, b2, wlv, blv, eps)
    return out[:B]


def init_params(key, D, M, L):
    k1, k2, k3 = jax.random.split(key, 3)
    # deterministic synthetic init (not a checkpoint load)
    w1 = 0.05 * jax.random.normal(k1, (D, M), jnp.float32)
    b1 = jnp.zeros((1, M), jnp.float32)
    w2 = 0.05 * jax.random.normal(k2, (M, M), jnp.float32)
    b2 = jnp.zeros((1, M), jnp.float32)
    w3 = 0.05 * jax.random.normal(k3, (M, 2 * L), jnp.float32)
    b3 = jnp.zeros((1, 2 * L), jnp.float32)
    # pre-split final layer == torch.chunk(h, 2, dim=1)
    return {
        "w1": w1, "b1": b1,
        "w2": w2, "b2": b2,
        "w_mu": w3[:, :L], "b_mu": b3[:, :L],
        "w_lv": w3[:, L:], "b_lv": b3[:, L:],
    }


def reference_log_prob(x, params, eps):
    """Full (non-simplified) chain: mu & log_var heads, reparameterize, log_normal_diag.
    Mirrors the kernel's mixed-precision matmul policy (bf16 operands, f32 accum)."""
    w1 = params["w1"].astype(jnp.bfloat16)
    w2 = params["w2"].astype(jnp.bfloat16)
    wmu = params["w_mu"].astype(jnp.bfloat16)
    wlv = params["w_lv"].astype(jnp.bfloat16)

    h1 = jnp.dot(x.astype(jnp.bfloat16), w1,
                 preferred_element_type=jnp.float32) + params["b1"]
    h1 = _leaky_relu(h1).astype(jnp.bfloat16)
    h2 = jnp.dot(h1, w2, preferred_element_type=jnp.float32) + params["b2"]
    h2 = _leaky_relu(h2).astype(jnp.bfloat16)

    mu = jnp.dot(h2, wmu, preferred_element_type=jnp.float32) + params["b_mu"]
    log_var = jnp.dot(h2, wlv, preferred_element_type=jnp.float32) + params["b_lv"]

    std = jnp.exp(0.5 * log_var)
    z = mu + std * eps
    return (NEG_HALF_LOG_2PI
            - 0.5 * log_var
            - 0.5 * jnp.exp(-log_var) * (z - mu) ** 2)


if __name__ == "__main__":
    # Small-but-tiled shapes: two batch tiles of 256 exercise the grid + pipelining.
    B, D, M, L = 512, 64, 128, 64

    key = jax.random.PRNGKey(0)
    kx, kp, ke = jax.random.split(key, 3)

    x = jax.random.normal(kx, (B, D), jnp.float32)
    params = init_params(kp, D, M, L)
    # torch.randn_like(std) -> noise drawn deterministically here and passed in.
    eps = jax.random.normal(ke, (B, L), jnp.float32)

    out = jax.block_until_ready(encoder_log_prob(x, params, eps))
    ref = jax.block_until_ready(reference_log_prob(x, params, eps))

    assert out.shape == (B, L)
    np.testing.assert_allclose(np.asarray(out), np.asarray(ref), rtol=1e-5, atol=1e-5)
    print("KERNEL_OK")
</pallas_src>

<mosaic_0001>
module attributes {stable_mosaic.version = 11 : i64} {
  func.func @encoder_logprob_kernel(%arg0: i32, %arg1: memref<256x64xf32, #tpu.memory_space<vmem>>, %arg2: memref<64x128xbf16, #tpu.memory_space<vmem>>, %arg3: memref<1x128xf32, #tpu.memory_space<vmem>>, %arg4: memref<128x128xbf16, #tpu.memory_space<vmem>>, %arg5: memref<1x128xf32, #tpu.memory_space<vmem>>, %arg6: memref<128x64xbf16, #tpu.memory_space<vmem>>, %arg7: memref<1x64xf32, #tpu.memory_space<vmem>>, %arg8: memref<256x64xf32, #tpu.memory_space<vmem>>, %arg9: memref<256x64xf32, #tpu.memory_space<vmem>>) attributes {dimension_semantics = [#tpu.dimension_semantics<parallel>], iteration_bounds = array<i64: 2>, scalar_prefetch = 0 : i64, scratch_operands = 0 : i64, tpu.core_type = #tpu.core_type<tc>, window_params = [{transform_indices = @transform_0, window_bounds = array<i64: 256, 64>}, {pipeline_mode = #tpu.pipeline_mode<synchronous>, transform_indices = @transform_1, window_bounds = array<i64: 64, 128>}, {pipeline_mode = #tpu.pipeline_mode<synchronous>, transform_indices = @transform_2, window_bounds = array<i64: 1, 128>}, {pipeline_mode = #tpu.pipeline_mode<synchronous>, transform_indices = @transform_3, window_bounds = array<i64: 128, 128>}, {pipeline_mode = #tpu.pipeline_mode<synchronous>, transform_indices = @transform_4, window_bounds = array<i64: 1, 128>}, {pipeline_mode = #tpu.pipeline_mode<synchronous>, transform_indices = @transform_5, window_bounds = array<i64: 128, 64>}, {pipeline_mode = #tpu.pipeline_mode<synchronous>, transform_indices = @transform_6, window_bounds = array<i64: 1, 64>}, {transform_indices = @transform_7, window_bounds = array<i64: 256, 64>}, {transform_indices = @transform_8, window_bounds = array<i64: 256, 64>}]} {
    %c0 = arith.constant 0 : index
    %c0_0 = arith.constant 0 : index
    %0 = vector.load %arg1[%c0, %c0_0] : memref<256x64xf32, #tpu.memory_space<vmem>>, vector<256x64xf32>
    %1 = arith.truncf %0 : vector<256x64xf32> to vector<256x64xbf16>
    %c0_1 = arith.constant 0 : index
    %c0_2 = arith.constant 0 : index
    %2 = vector.load %arg2[%c0_1, %c0_2] : memref<64x128xbf16, #tpu.memory_space<vmem>>, vector<64x128xbf16>
    %cst = arith.constant dense<0.000000e+00> : vector<256x128xf32>
    %3 = tpu.matmul %1, %2, %cst {dimension_numbers = #tpu.dot_dimension_numbers<[1], [0], [0], [1], [0, 0, 1, 1], [], []>} : vector<256x64xbf16>, vector<64x128xbf16>, vector<256x128xf32> -> vector<256x128xf32>
    %c0_3 = arith.constant 0 : index
    %c0_4 = arith.constant 0 : index
    %4 = vector.load %arg3[%c0_3, %c0_4] : memref<1x128xf32, #tpu.memory_space<vmem>>, vector<1x128xf32>
    %5 = vector.broadcast %4 : vector<1x128xf32> to vector<256x128xf32>
    %6 = arith.addf %3, %5 : vector<256x128xf32>
    %cst_5 = arith.constant 0.000000e+00 : f32
    %7 = vector.broadcast %cst_5 : f32 to vector<256x128xf32>
    %8 = arith.cmpf ogt, %6, %7 : vector<256x128xf32>
    %cst_6 = arith.constant 0.00999999977 : f32
    %9 = vector.broadcast %cst_6 : f32 to vector<256x128xf32>
    %10 = arith.mulf %9, %6 : vector<256x128xf32>
    %11 = arith.select %8, %6, %10 : vector<256x128xi1>, vector<256x128xf32>
    %12 = arith.truncf %11 : vector<256x128xf32> to vector<256x128xbf16>
    %c0_7 = arith.constant 0 : index
    %c0_8 = arith.constant 0 : index
    %13 = vector.load %arg4[%c0_7, %c0_8] : memref<128x128xbf16, #tpu.memory_space<vmem>>, vector<128x128xbf16>
    %cst_9 = arith.constant dense<0.000000e+00> : vector<256x128xf32>
    %14 = tpu.matmul %12, %13, %cst_9 {dimension_numbers = #tpu.dot_dimension_numbers<[1], [0], [0], [1], [0, 0, 1, 1], [], []>} : vector<256x128xbf16>, vector<128x128xbf16>, vector<256x128xf32> -> vector<256x128xf32>
    %c0_10 = arith.constant 0 : index
    %c0_11 = arith.constant 0 : index
    %15 = vector.load %arg5[%c0_10, %c0_11] : memref<1x128xf32, #tpu.memory_space<vmem>>, vector<1x128xf32>
    %16 = vector.broadcast %15 : vector<1x128xf32> to vector<256x128xf32>
    %17 = arith.addf %14, %16 : vector<256x128xf32>
    %cst_12 = arith.constant 0.000000e+00 : f32
    %18 = vector.broadcast %cst_12 : f32 to vector<256x128xf32>
    %19 = arith.cmpf ogt, %17, %18 : vector<256x128xf32>
    %cst_13 = arith.constant 0.00999999977 : f32
    %20 = vector.broadcast %cst_13 : f32 to vector<256x128xf32>
    %21 = arith.mulf %20, %17 : vector<256x128xf32>
    %22 = arith.select %19, %17, %21 : vector<256x128xi1>, vector<256x128xf32>
    %23 = arith.truncf %22 : vector<256x128xf32> to vector<256x128xbf16>
    %c0_14 = arith.constant 0 : index
    %c0_15 = arith.constant 0 : index
    %24 = vector.load %arg6[%c0_14, %c0_15] : memref<128x64xbf16, #tpu.memory_space<vmem>>, vector<128x64xbf16>
    %cst_16 = arith.constant dense<0.000000e+00> : vector<256x64xf32>
    %25 = tpu.matmul %23, %24, %cst_16 {dimension_numbers = #tpu.dot_dimension_numbers<[1], [0], [0], [1], [0, 0, 1, 1], [], []>} : vector<256x128xbf16>, vector<128x64xbf16>, vector<256x64xf32> -> vector<256x64xf32>
    %c0_17 = arith.constant 0 : index
    %c0_18 = arith.constant 0 : index
    %26 = vector.load %arg7[%c0_17, %c0_18] : memref<1x64xf32, #tpu.memory_space<vmem>>, vector<1x64xf32>
    %27 = vector.broadcast %26 : vector<1x64xf32> to vector<256x64xf32>
    %28 = arith.addf %25, %27 : vector<256x64xf32>
    %c0_19 = arith.constant 0 : index
    %c0_20 = arith.constant 0 : index
    %29 = vector.load %arg8[%c0_19, %c0_20] : memref<256x64xf32, #tpu.memory_space<vmem>>, vector<256x64xf32>
    %cst_21 = arith.constant 5.000000e-01 : f32
    %30 = vector.broadcast %cst_21 : f32 to vector<256x64xf32>
    %31 = arith.mulf %30, %28 : vector<256x64xf32>
    %cst_22 = arith.constant -0.918938517 : f32
    %32 = vector.broadcast %cst_22 : f32 to vector<256x64xf32>
    %33 = arith.subf %32, %31 : vector<256x64xf32>
    %cst_23 = arith.constant 5.000000e-01 : f32
    %34 = vector.broadcast %cst_23 : f32 to vector<256x64xf32>
    %35 = arith.mulf %34, %29 : vector<256x64xf32>
    %36 = arith.mulf %35, %29 : vector<256x64xf32>
    %37 = arith.subf %33, %36 : vector<256x64xf32>
    %c0_24 = arith.constant 0 : index
    %c0_25 = arith.constant 0 : index
    %38 = vector.load %arg9[%c0_24, %c0_25] : memref<256x64xf32, #tpu.memory_space<vmem>>, vector<256x64xf32>
    tpu.vector_store %arg9[%c0_24, %c0_25], %37 {strides = array<i32>} : memref<256x64xf32, #tpu.memory_space<vmem>>, vector<256x64xf32>,
    return
  }
  func.func @transform_0(%arg0: i32) -> (i32, i32) {
    %c0_i32 = arith.constant 0 : i32
    %c0_i32_0 = arith.constant 0 : i32
    return %arg0, %c0_i32 : i32, i32
  }
  func.func @transform_1(%arg0: i32) -> (i32, i32) {
    %c0_i32 = arith.constant 0 : i32
    %c0_i32_0 = arith.constant 0 : i32
    %c0_i32_1 = arith.constant 0 : i32
    return %c0_i32, %c0_i32_0 : i32, i32
  }
  func.func @transform_2(%arg0: i32) -> (i32, i32) {
    %c0_i32 = arith.constant 0 : i32
    %c0_i32_0 = arith.constant 0 : i32
    %c0_i32_1 = arith.constant 0 : i32
    return %c0_i32, %c0_i32_0 : i32, i32
  }
  func.func @transform_3(%arg0: i32) -> (i32, i32) {
    %c0_i32 = arith.constant 0 : i32
    %c0_i32_0 = arith.constant 0 : i32
    %c0_i32_1 = arith.constant 0 : i32
    return %c0_i32, %c0_i32_0 : i32, i32
  }
  func.func @transform_4(%arg0: i32) -> (i32, i32) {
    %c0_i32 = arith.constant 0 : i32
    %c0_i32_0 = arith.constant 0 : i32
    %c0_i32_1 = arith.constant 0 : i32
    return %c0_i32, %c0_i32_0 : i32, i32
  }
  func.func @transform_5(%arg0: i32) -> (i32, i32) {
    %c0_i32 = arith.constant 0 : i32
    %c0_i32_0 = arith.constant 0 : i32
    %c0_i32_1 = arith.constant 0 : i32
    return %c0_i32, %c0_i32_0 : i32, i32
  }
  func.func @transform_6(%arg0: i32) -> (i32, i32) {
    %c0_i32 = arith.constant 0 : i32
    %c0_i32_0 = arith.constant 0 : i32
    %c0_i32_1 = arith.constant 0 : i32
    return %c0_i32, %c0_i32_0 : i32, i32
  }
  func.func @transform_7(%arg0: i32) -> (i32, i32) {
    %c0_i32 = arith.constant 0 : i32
    %c0_i32_0 = arith.constant 0 : i32
    return %arg0, %c0_i32 : i32, i32
  }
  func.func @transform_8(%arg0: i32) -> (i32, i32) {
    %c0_i32 = arith.constant 0 : i32
    %c0_i32_0 = arith.constant 0 : i32
    return %arg0, %c0_i32 : i32, i32
  }
}

</mosaic_0001>

<llo_original>
// kernel: tpu_custom_call.1
$region0: #{tpu_custom_call.1}
  #allocation0 [shape = 'u32[]', space=smem, size = 0x4, offset = 0x4, fixed_abs, tag = 'smem constant byte address 0x4 - core index']
  #allocation1 [shape = 'u32[144,128]{1,0:T(1,128)}', space=vmem, size = 0x12000, scoped, tag = 'internal scratch']
  %s0 = inlined_call_operand.vmem [shape: f32[512,64], index: 0, kind: input, shape index: {}]
  %s1 = inlined_call_operand.vmem [shape: bf16[64,128], index: 1, kind: input, shape index: {}]
  %s2 = inlined_call_operand.vmem [shape: f32[1,128], index: 2, kind: input, shape index: {}]
  %s3 = inlined_call_operand.vmem [shape: bf16[128,128], index: 3, kind: input, shape index: {}]
  %s4 = inlined_call_operand.vmem [shape: f32[1,128], index: 4, kind: input, shape index: {}]
  %s5 = inlined_call_operand.vmem [shape: bf16[128,64], index: 5, kind: input, shape index: {}]
  %s6 = inlined_call_operand.vmem [shape: f32[1,64], index: 6, kind: input, shape index: {}]
  %s7 = inlined_call_operand.vmem [shape: f32[512,64], index: 7, kind: input, shape index: {}]
  %s8 = inlined_call_operand.vmem [shape: f32[512,64], index: 8, kind: output, shape index: {}]
  %s9 = sld [smem:[#allocation0]]
  $region65: #{tpu_custom_call.1} parent=0
    _
  %s11 = ssub.s32 1, %s9
  %s12 = scalar_select 0, %s11, %s9
  loop: start=0, step=1, limit=4
  $region2: #{tpu_custom_call.1} parent=0 // loop_pre_header
    _
  $region3: #{tpu_custom_call.1} parent=0 // loop_header
    %s14 = sphi 0, %s18
    %p15 = scmp.ge.s32.totalorder %s14, 4
    %s24 = sphi 0, %s26
    %s27 = sphi 0, %s24
    %s28 = sphi 0, %s27
    %s44 = sphi 0, %s28
    %s48 = sphi 0, %s48
    %s50 = sphi 0, %s48
    %s51 = sphi 0, %s50
    %s65 = sphi 0, %s51
    %s69 = sphi 0, %s69
    %s71 = sphi 0, %s69
    %s72 = sphi 0, %s71
    %s86 = sphi 0, %s72
    %s90 = sphi 0, %s90
    %s92 = sphi 0, %s90
    %s93 = sphi 0, %s92
    %s107 = sphi 0, %s93
    %s111 = sphi 0, %s111
    %s113 = sphi 0, %s111
    %s114 = sphi 0, %s113
    %s128 = sphi 0, %s114
    %s132 = sphi 0, %s132
    %s134 = sphi 0, %s132
    %s135 = sphi 0, %s134
    %s149 = sphi 0, %s135
    %s153 = sphi 0, %s153
    %s155 = sphi 0, %s153
    %s156 = sphi 0, %s155
    %s170 = sphi 0, %s156
    %s176 = sphi 0, %s178
    %s179 = sphi 0, %s176
    %s180 = sphi 0, %s179
    %s196 = sphi 0, %s180
    %s202 = sphi 0, %s204
    %s205 = sphi 0, %s202
    %s206 = sphi 0, %s205
    %s222 = sphi 0, %s206
  $region4: #{tpu_custom_call.1} parent=0 // loop_header_branch
    %17 = sbr.rel (%p15) target = $region8
  $region5: #{tpu_custom_call.1} parent=0 // loop_body
    %s19 = ssub.s32 %s14, 1
    %s20 = ssub.s32 %s14, 2
    %s21 = sadd.s32 %s14, 1
    %s22 = ssub.s32 %s14, %s21
    %p23 = scmp.eq.s32.totalorder %s22, 0
    %s25 = sadd.s32 %s24, 1
    %s26 = scalar_select %p23, %s24, %s25
    %p29 = pneg %p23
    %p30 = scmp.eq.s32.totalorder %s14, 1
    %p31 = por %p29, %p30
    %p32 = scmp.ne.s32.totalorder %s24, %s27
    %p33 = scmp.eq.s32.totalorder %s14, 0
    %p34 = por %p32, %p33
    %p35 = scmp.ne.s32.totalorder %s24, %s27
    %p36 = scmp.eq.s32.totalorder %s19, 1
    %p37 = por %p35, %p36
    %p38 = scmp.ne.s32.totalorder %s27, %s28
    %p39 = scmp.eq.s32.totalorder %s19, 0
    %p40 = por %p38, %p39
    %p41 = scmp.ne.s32.totalorder %s27, %s28
    %p42 = scmp.eq.s32.totalorder %s20, 1
    %p43 = por %p41, %p42
    %p45 = scmp.ne.s32.totalorder %s28, %s44
    %p46 = scmp.eq.s32.totalorder %s20, 0
    %p47 = por %p45, %p46
    %s49 = sadd.s32 %s48, 1
    %p52 = scmp.eq.s32.totalorder %s14, 1
    %p53 = scmp.ne.s32.totalorder %s48, %s50
    %p54 = scmp.eq.s32.totalorder %s14, 0
    %p55 = por %p53, %p54
    %p56 = scmp.ne.s32.totalorder %s48, %s50
    %p57 = scmp.eq.s32.totalorder %s19, 1
    %p58 = por %p56, %p57
    %p59 = scmp.ne.s32.totalorder %s50, %s51
    %p60 = scmp.eq.s32.totalorder %s19, 0
    %p61 = por %p59, %p60
    %p62 = scmp.ne.s32.totalorder %s50, %s51
    %p63 = scmp.eq.s32.totalorder %s20, 1
    %p64 = por %p62, %p63
    %p66 = scmp.ne.s32.totalorder %s51, %s65
    %p67 = scmp.eq.s32.totalorder %s20, 0
    %p68 = por %p66, %p67
    %s70 = sadd.s32 %s69, 1
    %p73 = scmp.eq.s32.totalorder %s14, 1
    %p74 = scmp.ne.s32.totalorder %s69, %s71
    %p75 = scmp.eq.s32.totalorder %s14, 0
    %p76 = por %p74, %p75
    %p77 = scmp.ne.s32.totalorder %s69, %s71
    %p78 = scmp.eq.s32.totalorder %s19, 1
    %p79 = por %p77, %p78
    %p80 = scmp.ne.s32.totalorder %s71, %s72
    %p81 = scmp.eq.s32.totalorder %s19, 0
    %p82 = por %p80, %p81
    %p83 = scmp.ne.s32.totalorder %s71, %s72
    %p84 = scmp.eq.s32.totalorder %s20, 1
    %p85 = por %p83, %p84
    %p87 = scmp.ne.s32.totalorder %s72, %s86
    %p88 = scmp.eq.s32.totalorder %s20, 0
    %p89 = por %p87, %p88
    %s91 = sadd.s32 %s90, 1
    %p94 = scmp.eq.s32.totalorder %s14, 1
    %p95 = scmp.ne.s32.totalorder %s90, %s92
    %p96 = scmp.eq.s32.totalorder %s14, 0
    %p97 = por %p95, %p96
    %p98 = scmp.ne.s32.totalorder %s90, %s92
    %p99 = scmp.eq.s32.totalorder %s19, 1
    %p100 = por %p98, %p99
    %p101 = scmp.ne.s32.totalorder %s92, %s93
    %p102 = scmp.eq.s32.totalorder %s19, 0
    %p103 = por %p101, %p102
    %p104 = scmp.ne.s32.totalorder %s92, %s93
    %p105 = scmp.eq.s32.totalorder %s20, 1
    %p106 = por %p104, %p105
    %p108 = scmp.ne.s32.totalorder %s93, %s107
    %p109 = scmp.eq.s32.totalorder %s20, 0
    %p110 = por %p108, %p109
    %s112 = sadd.s32 %s111, 1
    %p115 = scmp.eq.s32.totalorder %s14, 1
    %p116 = scmp.ne.s32.totalorder %s111, %s113
    %p117 = scmp.eq.s32.totalorder %s14, 0
    %p118 = por %p116, %p117
    %p119 = scmp.ne.s32.totalorder %s111, %s113
    %p120 = scmp.eq.s32.totalorder %s19, 1
    %p121 = por %p119, %p120
    %p122 = scmp.ne.s32.totalorder %s113, %s114
    %p123 = scmp.eq.s32.totalorder %s19, 0
    %p124 = por %p122, %p123
    %p125 = scmp.ne.s32.totalorder %s113, %s114
    %p126 = scmp.eq.s32.totalorder %s20, 1
    %p127 = por %p125, %p126
    %p129 = scmp.ne.s32.totalorder %s114, %s128
    %p130 = scmp.eq.s32.totalorder %s20, 0
    %p131 = por %p129, %p130
    %s133 = sadd.s32 %s132, 1
    %p136 = scmp.eq.s32.totalorder %s14, 1
    %p137 = scmp.ne.s32.totalorder %s132, %s134
    %p138 = scmp.eq.s32.totalorder %s14, 0
    %p139 = por %p137, %p138
    %p140 = scmp.ne.s32.totalorder %s132, %s134
    %p141 = scmp.eq.s32.totalorder %s19, 1
    %p142 = por %p140, %p141
    %p143 = scmp.ne.s32.totalorder %s134, %s135
    %p144 = scmp.eq.s32.totalorder %s19, 0
    %p145 = por %p143, %p144
    %p146 = scmp.ne.s32.totalorder %s134, %s135
    %p147 = scmp.eq.s32.totalorder %s20, 1
    %p148 = por %p146, %p147
    %p150 = scmp.ne.s32.totalorder %s135, %s149
    %p151 = scmp.eq.s32.totalorder %s20, 0
    %p152 = por %p150, %p151
    %s154 = sadd.s32 %s153, 1
    %p157 = scmp.eq.s32.totalorder %s14, 1
    %p158 = scmp.ne.s32.totalorder %s153, %s155
    %p159 = scmp.eq.s32.totalorder %s14, 0
    %p160 = por %p158, %p159
    %p161 = scmp.ne.s32.totalorder %s153, %s155
    %p162 = scmp.eq.s32.totalorder %s19, 1
    %p163 = por %p161, %p162
    %p164 = scmp.ne.s32.totalorder %s155, %s156
    %p165 = scmp.eq.s32.totalorder %s19, 0
    %p166 = por %p164, %p165
    %p167 = scmp.ne.s32.totalorder %s155, %s156
    %p168 = scmp.eq.s32.totalorder %s20, 1
    %p169 = por %p167, %p168
    %p171 = scmp.ne.s32.totalorder %s156, %s170
    %p172 = scmp.eq.s32.totalorder %s20, 0
    %p173 = por %p171, %p172
    %s174 = ssub.s32 %s14, %s21
    %p175 = scmp.eq.s32.totalorder %s174, 0
    %s177 = sadd.s32 %s176, 1
    %s178 = scalar_select %p175, %s176, %s177
    %p181 = pneg %p175
    %p182 = scmp.eq.s32.totalorder %s14, 1
    %p183 = por %p181, %p182
    %p184 = scmp.ne.s32.totalorder %s176, %s179
    %p185 = scmp.eq.s32.totalorder %s14, 0
    %p186 = por %p184, %p185
    %p187 = scmp.ne.s32.totalorder %s176, %s179
    %p188 = scmp.eq.s32.totalorder %s19, 1
    %p189 = por %p187, %p188
    %p190 = scmp.ne.s32.totalorder %s179, %s180
    %p191 = scmp.eq.s32.totalorder %s19, 0
    %p192 = por %p190, %p191
    %p193 = scmp.ne.s32.totalorder %s179, %s180
    %p194 = scmp.eq.s32.totalorder %s20, 1
    %p195 = por %p193, %p194
    %p197 = scmp.ne.s32.totalorder %s180, %s196
    %p198 = scmp.eq.s32.totalorder %s20, 0
    %p199 = por %p197, %p198
    %s200 = ssub.s32 %s14, %s21
    %p201 = scmp.eq.s32.totalorder %s200, 0
    %s203 = sadd.s32 %s202, 1
    %s204 = scalar_select %p201, %s202, %s203
    %p207 = pneg %p201
    %p208 = scmp.eq.s32.totalorder %s14, 1
    %p209 = por %p207, %p208
    %p210 = scmp.ne.s32.totalorder %s202, %s205
    %p211 = scmp.eq.s32.totalorder %s14, 0
    %p212 = por %p210, %p211
    %p213 = scmp.ne.s32.totalorder %s202, %s205
    %p214 = scmp.eq.s32.totalorder %s19, 1
    %p215 = por %p213, %p214
    %p216 = scmp.ne.s32.totalorder %s205, %s206
    %p217 = scmp.eq.s32.totalorder %s19, 0
    %p218 = por %p216, %p217
    %p219 = scmp.ne.s32.totalorder %s205, %s206
    %p220 = scmp.eq.s32.totalorder %s20, 1
    %p221 = por %p219, %p220
    %p223 = scmp.ne.s32.totalorder %s206, %s222
    %p224 = scmp.eq.s32.totalorder %s20, 0
    %p225 = por %p223, %p224
    %p226 = scmp.le.s32.totalorder 1, %s14
    %p227 = scmp.lt.s32.totalorder %s14, 3
    %p228 = pnand %p226, %p227
    %p229 = pneg %p228
    // Predicated region
    $region9: #{tpu_custom_call.1} parent=5 // pred_check
      _
    $region10: #{tpu_custom_call.1} parent=5 // pred_check_branch
      %231 = sbr.rel (%p228) target = $region12
    $region11: #{tpu_custom_call.1} parent=5 // pred_region
      %s232 = ssub.s32 %s14, 1
      // Predicated region
      $region13: #{tpu_custom_call.1} parent=11 // pred_check
        %p233 = pneg %p61
      $region14: #{tpu_custom_call.1} parent=11 // pred_check_branch
        %235 = sbr.rel (%p233) target = $region16
      $region15: #{tpu_custom_call.1} parent=11 // pred_region
        _
      $region16: #{tpu_custom_call.1} parent=11 // pred_fallthru
        _
      // Predicated region
      $region17: #{tpu_custom_call.1} parent=11 // pred_check
        %p236 = pneg %p82
      $region18: #{tpu_custom_call.1} parent=11 // pred_check_branch
        %238 = sbr.rel (%p236) target = $region20
      $region19: #{tpu_custom_call.1} parent=11 // pred_region
        _
      $region20: #{tpu_custom_call.1} parent=11 // pred_fallthru
        _
      // Predicated region
      $region21: #{tpu_custom_call.1} parent=11 // pred_check
        %p239 = pneg %p103
      $region22: #{tpu_custom_call.1} parent=11 // pred_check_branch
        %241 = sbr.rel (%p239) target = $region24
      $region23: #{tpu_custom_call.1} parent=11 // pred_region
        _
      $region24: #{tpu_custom_call.1} parent=11 // pred_fallthru
        _
      // Predicated region
      $region25: #{tpu_custom_call.1} parent=11 // pred_check
        %p242 = pneg %p124
      $region26: #{tpu_custom_call.1} parent=11 // pred_check_branch
        %244 = sbr.rel (%p242) target = $region28
      $region27: #{tpu_custom_call.1} parent=11 // pred_region
        _
      $region28: #{tpu_custom_call.1} parent=11 // pred_fallthru
        _
      // Predicated region
      $region29: #{tpu_custom_call.1} parent=11 // pred_check
        %p245 = pneg %p145
      $region30: #{tpu_custom_call.1} parent=11 // pred_check_branch
        %247 = sbr.rel (%p245) target = $region32
      $region31: #{tpu_custom_call.1} parent=11 // pred_region
        _
      $region32: #{tpu_custom_call.1} parent=11 // pred_fallthru
        _
      // Predicated region
      $region33: #{tpu_custom_call.1} parent=11 // pred_check
        %p248 = pneg %p166
      $region34: #{tpu_custom_call.1} parent=11 // pred_check_branch
        %250 = sbr.rel (%p248) target = $region36
      $region35: #{tpu_custom_call.1} parent=11 // pred_region
        _
      $region36: #{tpu_custom_call.1} parent=11 // pred_fallthru
        _
    $region12: #{tpu_custom_call.1} parent=5 // pred_fallthru
      _
    %p251 = scmp.lt.s32.totalorder %s14, 2
    // Predicated region
    $region37: #{tpu_custom_call.1} parent=5 // pred_check
      %p252 = pneg %p251
    $region38: #{tpu_custom_call.1} parent=5 // pred_check_branch
      %254 = sbr.rel (%p252) target = $region40
    $region39: #{tpu_custom_call.1} parent=5 // pred_region
      // Predicated region
      $region41: #{tpu_custom_call.1} parent=39 // pred_check
        %p255 = pneg %p34
      $region42: #{tpu_custom_call.1} parent=39 // pred_check_branch
        %257 = sbr.rel (%p255) target = $region44
      $region43: #{tpu_custom_call.1} parent=39 // pred_region
        %s258 = smul.u32 32, %s14
        %p259 = scmp.lt.s32.totalorder %s258, 63
        %s260 = scalar_select %p259, %s258, 63
        %s261 = smul.addr %s260, 8
        %s262 = scalar_lea.vmem %s0, %s261
        %s263 = smul.u32 32, %s14
      $region44: #{tpu_custom_call.1} parent=39 // pred_fallthru
        _
      // Predicated region
      $region45: #{tpu_custom_call.1} parent=39 // pred_check
        %p264 = pneg %p186
      $region46: #{tpu_custom_call.1} parent=39 // pred_check_branch
        %266 = sbr.rel (%p264) target = $region48
      $region47: #{tpu_custom_call.1} parent=39 // pred_region
        %s267 = smul.u32 32, %s14
        %p268 = scmp.lt.s32.totalorder %s267, 63
        %s269 = scalar_select %p268, %s267, 63
        %s270 = smul.addr %s269, 8
        %s271 = scalar_lea.vmem %s7, %s270
        %s272 = smul.u32 32, %s14
      $region48: #{tpu_custom_call.1} parent=39 // pred_fallthru
        _
    $region40: #{tpu_custom_call.1} parent=5 // pred_fallthru
      _
    %p273 = scmp.le.s32.totalorder 1, %s14
    %p274 = scmp.lt.s32.totalorder %s14, 3
    %p275 = pnand %p273, %p274
    %p276 = pneg %p275
    // Predicated region
    $region49: #{tpu_custom_call.1} parent=5 // pred_check
      _
    $region50: #{tpu_custom_call.1} parent=5 // pred_check_branch
      %278 = sbr.rel (%p275) target = $region52
    $region51: #{tpu_custom_call.1} parent=5 // pred_region
      %s279 = ssub.s32 %s14, 1
      %s280 = smul.u32 32, %s19
      %p281 = scmp.lt.s32.totalorder %s280, 63
      %s282 = scalar_select %p281, %s280, 63
      %s283 = smul.addr %s282, 8
      %s284 = scalar_lea.vmem %s0, %s283
      %p285 = pneg %p40
      %p286 = pneg %p37
      %p287 = pneg %p61
      %p288 = pneg %p58
      %p289 = pneg %p82
      %p290 = pneg %p79
      %p291 = pneg %p103
      %p292 = pneg %p100
      %p293 = pneg %p124
      %p294 = pneg %p121
      %p295 = pneg %p145
      %p296 = pneg %p142
      %p297 = pneg %p166
      %p298 = pneg %p163
      %s299 = smul.u32 32, %s19
      %p300 = scmp.lt.s32.totalorder %s299, 63
      %s301 = scalar_select %p300, %s299, 63
      %s302 = smul.addr %s301, 8
      %s303 = scalar_lea.vmem %s7, %s302
      %p304 = pneg %p192
      %p305 = pneg %p189
      %p306 = pneg %p218
      %p307 = pneg %p215
      %s308 = smul.u32 32, %s19
      %p309 = scmp.lt.s32.totalorder %s308, 63
      %s310 = scalar_select %p309, %s308, 63
      %s311 = smul.addr %s310, 8
      %s312 = scalar_lea.vmem %s8, %s311
      %s313 = smul.u32 32, %s19
      %p314 = scmp.lt.s32.totalorder %s313, 63
      %s315 = scalar_select %p314, %s313, 63
      %s316 = smul.addr %s315, 8
      %s317 = scalar_lea.vmem %s0, %s316
      %s318 = smul.u32 32, %s19
      %s319 = smul.u32 32, %s19
      %p320 = scmp.lt.s32.totalorder %s319, 63
      %s321 = scalar_select %p320, %s319, 63
      %s322 = smul.addr %s321, 8
      %s323 = scalar_lea.vmem %s7, %s322
      %s324 = smul.u32 32, %s19
      %s325 = smul.u32 32, %s19
      %p326 = scmp.lt.s32.totalorder %s325, 63
      %s327 = scalar_select %p326, %s325, 63
      %s328 = smul.addr %s327, 8
      %s329 = scalar_lea.vmem %s8, %s328
      %s330 = smul.u32 32, %s19
      %v332 = vld [vmem:[%s317] sm:$0xff]
      %v333 = vld [vmem:[%s317 + $0x8] sm:$0xff]
      %v334 = vld [vmem:[%s317 + $0x10] sm:$0xff]
      %v335 = vld [vmem:[%s317 + $0x18] sm:$0xff]
      %v336 = vld [vmem:[%s317 + $0x20] sm:$0xff]
      %v337 = vld [vmem:[%s317 + $0x28] sm:$0xff]
      %v338 = vld [vmem:[%s317 + $0x30] sm:$0xff]
      %v339 = vld [vmem:[%s317 + $0x38] sm:$0xff]
      %v340 = vld [vmem:[%s317 + $0x40] sm:$0xff]
      %v341 = vld [vmem:[%s317 + $0x48] sm:$0xff]
      %v342 = vld [vmem:[%s317 + $0x50] sm:$0xff]
      %v343 = vld [vmem:[%s317 + $0x58] sm:$0xff]
      %v344 = vld [vmem:[%s317 + $0x60] sm:$0xff]
      %v345 = vld [vmem:[%s317 + $0x68] sm:$0xff]
      %v346 = vld [vmem:[%s317 + $0x70] sm:$0xff]
      %v347 = vld [vmem:[%s317 + $0x78] sm:$0xff]
      %v348 = vld [vmem:[%s317 + $0x80] sm:$0xff]
      %v349 = vld [vmem:[%s317 + $0x88] sm:$0xff]
      %v350 = vld [vmem:[%s317 + $0x90] sm:$0xff]
      %v351 = vld [vmem:[%s317 + $0x98] sm:$0xff]
      %v352 = vld [vmem:[%s317 + $0xa0] sm:$0xff]
      %v353 = vld [vmem:[%s317 + $0xa8] sm:$0xff]
      %v354 = vld [vmem:[%s317 + $0xb0] sm:$0xff]
      %v355 = vld [vmem:[%s317 + $0xb8] sm:$0xff]
      %v356 = vld [vmem:[%s317 + $0xc0] sm:$0xff]
      %v357 = vld [vmem:[%s317 + $0xc8] sm:$0xff]
      %v358 = vld [vmem:[%s317 + $0xd0] sm:$0xff]
      %v359 = vld [vmem:[%s317 + $0xd8] sm:$0xff]
      %v360 = vld [vmem:[%s317 + $0xe0] sm:$0xff]
      %v361 = vld [vmem:[%s317 + $0xe8] sm:$0xff]
      %v362 = vld [vmem:[%s317 + $0xf0] sm:$0xff]
      %v363 = vld [vmem:[%s317 + $0xf8] sm:$0xff]
      %v364 = vpack.c.bf16 %v333, %v332
      %v365 = vpack.c.bf16 %v335, %v334
      %v366 = vpack.c.bf16 %v337, %v336
      %v367 = vpack.c.bf16 %v339, %v338
      %v368 = vpack.c.bf16 %v341, %v340
      %v369 = vpack.c.bf16 %v343, %v342
      %v370 = vpack.c.bf16 %v345, %v344
      %v371 = vpack.c.bf16 %v347, %v346
      %v372 = vpack.c.bf16 %v349, %v348
      %v373 = vpack.c.bf16 %v351, %v350
      %v374 = vpack.c.bf16 %v353, %v352
      %v375 = vpack.c.bf16 %v355, %v354
      %v376 = vpack.c.bf16 %v357, %v356
      %v377 = vpack.c.bf16 %v359, %v358
      %v378 = vpack.c.bf16 %v361, %v360
      %v379 = vpack.c.bf16 %v363, %v362
      %v380 = vld [vmem:[%s1] sm:$0xf]
      %v381 = vld [vmem:[%s1 + $0x4] sm:$0xf]
      %v382 = vld [vmem:[%s1 + $0x8] sm:$0xf]
      %v383 = vld [vmem:[%s1 + $0xc] sm:$0xf]
      %v384 = vld [vmem:[%s1 + $0x10] sm:$0xf]
      %v385 = vld [vmem:[%s1 + $0x14] sm:$0xf]
      %v386 = vld [vmem:[%s1 + $0x18] sm:$0xf]
      %v387 = vld [vmem:[%s1 + $0x1c] sm:$0xf]
      %v388 = vld [vmem:[%s2] sm:$0x1]
      %v390 = vlaneseq
      %v391 = vshrl.u32 %v390, 7
      %v392 = vsub.s32 0, %v391
      %v393 = vrot.slane %v388, %v392
      %v403 = vunpack.c.l.b16 %v380
      %v404 = vunpack.c.l.b16 %v381
      %v405 = vunpack.c.l.b16 %v382
      %v406 = vunpack.c.l.b16 %v383
      %v407 = vunpack.c.l.b16 %v384
      %v408 = vunpack.c.l.b16 %v385
      %v409 = vunpack.c.l.b16 %v386
      %v410 = vunpack.c.l.b16 %v387
      %v411 = vpack.c.b16 %v404, %v403
      %v412 = vpack.c.b16 %v406, %v405
      %v413 = vpack.c.b16 %v408, %v407
      %v414 = vpack.c.b16 %v410, %v409
      %vm419 = vcmask 523264
      %v421 = vsel %vm419, %v364, 0
      %v424 = vsel %vm419, %v365, 0
      %v427 = vsel %vm419, %v366, 0
      %v430 = vsel %vm419, %v367, 0
      %v433 = vsel %vm419, %v368, 0
      %v436 = vsel %vm419, %v369, 0
      %v439 = vsel %vm419, %v370, 0
      %v442 = vsel %vm419, %v371, 0
      %v445 = vsel %vm419, %v372, 0
      %v448 = vsel %vm419, %v373, 0
      %v451 = vsel %vm419, %v374, 0
      %v454 = vsel %vm419, %v375, 0
      %v457 = vsel %vm419, %v376, 0
      %v460 = vsel %vm419, %v377, 0
      %v463 = vsel %vm419, %v378, 0
      %v466 = vsel %vm419, %v379, 0
      %468 = vmatprep.subr.bf16.mxu0 0
      %469 = vmatpush1.bf16.msra.mxu0 %v411
      %470 = vmatprep.subr.bf16.mxu0 0
      %471 = vmatpush1.bf16.msra.mxu0 %v412
      %472 = vmatprep.subr.bf16.mxu0 0
      %473 = vmatpush1.bf16.msra.mxu0 %v413
      %474 = vmatprep.subr.bf16.mxu0 0
      %475 = vmatpush1.bf16.msra.mxu0 %v414
      %476 = vmatprep.subr.bf16.mxu0 0
      %477 = vmatpush1.bf16.msra.mxu0 0
      %478 = vmatprep.subr.bf16.mxu0 0
      %479 = vmatpush1.bf16.msra.mxu0 0
      %480 = vmatprep.subr.bf16.mxu0 0
      %481 = vmatpush1.bf16.msra.mxu0 0
      %482 = vmatprep.subr.bf16.mxu0 0
      %483 = vmatpush1.bf16.msra.mxu0 0
      %484 = vmatprep.subr.bf16.mxu0 0
      %485 = vmatpush1.bf16.msra.mxu0 0
      %486 = vmatprep.subr.bf16.mxu0 0
      %487 = vmatpush1.bf16.msra.mxu0 0
      %488 = vmatprep.subr.bf16.mxu0 0
      %489 = vmatpush1.bf16.msra.mxu0 0
      %490 = vmatprep.subr.bf16.mxu0 0
      %491 = vmatpush1.bf16.msra.mxu0 0
      %492 = vmatprep.subr.bf16.mxu0 0
      %493 = vmatpush1.bf16.msra.mxu0 0
      %494 = vmatprep.subr.bf16.mxu0 0
      %495 = vmatpush1.bf16.msra.mxu0 0
      %496 = vmatprep.subr.bf16.mxu0 0
      %497 = vmatpush1.bf16.msra.mxu0 0
      %498 = vmatprep.subr.bf16.mxu0 0
      %499 = vmatpush1.bf16.msra.mxu0 0
      %500 = vmatprep.mubr.bf16.mxu0 0
      %501 = vmatmul.mubr.bf16.gmra.mrb[0].mxu0 %v421
      %v502 = vpop.f32.mrb[0].mxu0
      %v503 = vadd.f32 %v393, %v502
      %v504 = vpop.f32.mrb[0].mxu0
      %v505 = vpop.f32.mrb[0].mxu0
      %v506 = vadd.f32 %v393, %v505
      %v507 = vpop.f32.mrb[0].mxu0
      %508 = vmatprep.mubr.bf16.mxu0 0
      %509 = vmatmul.mubr.bf16.gmra.mrb[0].mxu0 %v424
      %v510 = vpop.f32.mrb[0].mxu0
      %v511 = vadd.f32 %v393, %v510
      %v512 = vpop.f32.mrb[0].mxu0
      %v513 = vpop.f32.mrb[0].mxu0
      %v514 = vadd.f32 %v393, %v513
      %v515 = vpop.f32.mrb[0].mxu0
      %516 = vmatprep.mubr.bf16.mxu0 0
      %517 = vmatmul.mubr.bf16.gmra.mrb[0].mxu0 %v427
      %v518 = vpop.f32.mrb[0].mxu0
      %v519 = vadd.f32 %v393, %v518
      %v520 = vpop.f32.mrb[0].mxu0
      %v521 = vpop.f32.mrb[0].mxu0
      %v522 = vadd.f32 %v393, %v521
      %v523 = vpop.f32.mrb[0].mxu0
      %524 = vmatprep.mubr.bf16.mxu0 0
      %525 = vmatmul.mubr.bf16.gmra.mrb[0].mxu0 %v430
      %v526 = vpop.f32.mrb[0].mxu0
      %v527 = vadd.f32 %v393, %v526
      %v528 = vpop.f32.mrb[0].mxu0
      %v529 = vpop.f32.mrb[0].mxu0
      %v530 = vadd.f32 %v393, %v529
      %v531 = vpop.f32.mrb[0].mxu0
      %532 = vmatprep.mubr.bf16.mxu0 0
      %533 = vmatmul.mubr.bf16.gmra.mrb[0].mxu0 %v433
      %v534 = vpop.f32.mrb[0].mxu0
      %v535 = vadd.f32 %v393, %v534
      %v536 = vpop.f32.mrb[0].mxu0
      %v537 = vpop.f32.mrb[0].mxu0
      %v538 = vadd.f32 %v393, %v537
      %v539 = vpop.f32.mrb[0].mxu0
      %540 = vmatprep.mubr.bf16.mxu0 0
      %541 = vmatmul.mubr.bf16.gmra.mrb[0].mxu0 %v436
      %v542 = vpop.f32.mrb[0].mxu0
      %v543 = vadd.f32 %v393, %v542
      %v544 = vpop.f32.mrb[0].mxu0
      %v545 = vpop.f32.mrb[0].mxu0
      %v546 = vadd.f32 %v393, %v545
      %v547 = vpop.f32.mrb[0].mxu0
      %548 = vmatprep.mubr.bf16.mxu0 0
      %549 = vmatmul.mubr.bf16.gmra.mrb[0].mxu0 %v439
      %v550 = vpop.f32.mrb[0].mxu0
      %v551 = vadd.f32 %v393, %v550
      %v552 = vpop.f32.mrb[0].mxu0
      %v553 = vpop.f32.mrb[0].mxu0
      %v554 = vadd.f32 %v393, %v553
      %v555 = vpop.f32.mrb[0].mxu0
      %556 = vmatprep.mubr.bf16.mxu0 0
      %557 = vmatmul.mubr.bf16.gmra.mrb[0].mxu0 %v442
      %v558 = vpop.f32.mrb[0].mxu0
      %v559 = vadd.f32 %v393, %v558
      %v560 = vpop.f32.mrb[0].mxu0
      %v561 = vpop.f32.mrb[0].mxu0
      %v562 = vadd.f32 %v393, %v561
      %v563 = vpop.f32.mrb[0].mxu0
      %564 = vmatprep.mubr.bf16.mxu0 0
      %565 = vmatmul.mubr.bf16.gmra.mrb[0].mxu0 %v445
      %v566 = vpop.f32.mrb[0].mxu0
      %v567 = vadd.f32 %v393, %v566
      %v568 = vpop.f32.mrb[0].mxu0
      %v569 = vpop.f32.mrb[0].mxu0
      %v570 = vadd.f32 %v393, %v569
      %v571 = vpop.f32.mrb[0].mxu0
      %572 = vmatprep.mubr.bf16.mxu0 0
      %573 = vmatmul.mubr.bf16.gmra.mrb[0].mxu0 %v448
      %v574 = vpop.f32.mrb[0].mxu0
      %v575 = vadd.f32 %v393, %v574
      %v576 = vpop.f32.mrb[0].mxu0
      %v577 = vpop.f32.mrb[0].mxu0
      %v578 = vadd.f32 %v393, %v577
      %v579 = vpop.f32.mrb[0].mxu0
      %580 = vmatprep.mubr.bf16.mxu0 0
      %581 = vmatmul.mubr.bf16.gmra.mrb[0].mxu0 %v451
      %v582 = vpop.f32.mrb[0].mxu0
      %v583 = vadd.f32 %v393, %v582
      %v584 = vpop.f32.mrb[0].mxu0
      %v585 = vpop.f32.mrb[0].mxu0
      %v586 = vadd.f32 %v393, %v585
      %v587 = vpop.f32.mrb[0].mxu0
      %588 = vmatprep.mubr.bf16.mxu0 0
      %589 = vmatmul.mubr.bf16.gmra.mrb[0].mxu0 %v454
      %v590 = vpop.f32.mrb[0].mxu0
      %v591 = vadd.f32 %v393, %v590
      %v592 = vpop.f32.mrb[0].mxu0
      %v593 = vpop.f32.mrb[0].mxu0
      %v594 = vadd.f32 %v393, %v593
      %v595 = vpop.f32.mrb[0].mxu0
      %596 = vmatprep.mubr.bf16.mxu0 0
      %597 = vmatmul.mubr.bf16.gmra.mrb[0].mxu0 %v457
      %v598 = vpop.f32.mrb[0].mxu0
      %v599 = vadd.f32 %v393, %v598
      %v600 = vpop.f32.mrb[0].mxu0
      %v601 = vpop.f32.mrb[0].mxu0
      %v602 = vadd.f32 %v393, %v601
      %v603 = vpop.f32.mrb[0].mxu0
      %604 = vmatprep.mubr.bf16.mxu0 0
      %605 = vmatmul.mubr.bf16.gmra.mrb[0].mxu0 %v460
      %v606 = vpop.f32.mrb[0].mxu0
      %v607 = vadd.f32 %v393, %v606
      %v608 = vpop.f32.mrb[0].mxu0
      %v609 = vpop.f32.mrb[0].mxu0
      %v610 = vadd.f32 %v393, %v609
      %v611 = vpop.f32.mrb[0].mxu0
      %612 = vmatprep.mubr.bf16.mxu0 0
      %613 = vmatmul.mubr.bf16.gmra.mrb[0].mxu0 %v463
      %v614 = vpop.f32.mrb[0].mxu0
      %v615 = vadd.f32 %v393, %v614
      %v616 = vpop.f32.mrb[0].mxu0
      %v617 = vpop.f32.mrb[0].mxu0
      %v618 = vadd.f32 %v393, %v617
      %v619 = vpop.f32.mrb[0].mxu0
      %620 = vmatprep.mubr.bf16.mxu0 0
      %621 = vmatmul.mubr.bf16.gmra.mrb[0].mxu0 %v466
      %v622 = vpop.f32.mrb[0].mxu0
      %v623 = vadd.f32 %v393, %v622
      %v624 = vpop.f32.mrb[0].mxu0
      %v625 = vpop.f32.mrb[0].mxu0
      %v626 = vadd.f32 %v393, %v625
      %v627 = vpop.f32.mrb[0].mxu0
      %628 = vdwg.mxu0
      %vm629 = vcmp.gt.f32.partialorder %v503, 0.0
      %vm630 = vcmp.gt.f32.partialorder %v506, 0.0
      %vm631 = vcmp.gt.f32.partialorder %v511, 0.0
      %vm632 = vcmp.gt.f32.partialorder %v514, 0.0
      %vm633 = vcmp.gt.f32.partialorder %v519, 0.0
      %vm634 = vcmp.gt.f32.partialorder %v522, 0.0
      %vm635 = vcmp.gt.f32.partialorder %v527, 0.0
      %vm636 = vcmp.gt.f32.partialorder %v530, 0.0
      %vm637 = vcmp.gt.f32.partialorder %v535, 0.0
      %vm638 = vcmp.gt.f32.partialorder %v538, 0.0
      %vm639 = vcmp.gt.f32.partialorder %v543, 0.0
      %vm640 = vcmp.gt.f32.partialorder %v546, 0.0
      %vm641 = vcmp.gt.f32.partialorder %v551, 0.0
      %vm642 = vcmp.gt.f32.partialorder %v554, 0.0
      %vm643 = vcmp.gt.f32.partialorder %v559, 0.0
      %vm644 = vcmp.gt.f32.partialorder %v562, 0.0
      %vm645 = vcmp.gt.f32.partialorder %v567, 0.0
      %vm646 = vcmp.gt.f32.partialorder %v570, 0.0
      %vm647 = vcmp.gt.f32.partialorder %v575, 0.0
      %vm648 = vcmp.gt.f32.partialorder %v578, 0.0
      %vm649 = vcmp.gt.f32.partialorder %v583, 0.0
      %vm650 = vcmp.gt.f32.partialorder %v586, 0.0
      %vm651 = vcmp.gt.f32.partialorder %v591, 0.0
      %vm652 = vcmp.gt.f32.partialorder %v594, 0.0
      %vm653 = vcmp.gt.f32.partialorder %v599, 0.0
      %vm654 = vcmp.gt.f32.partialorder %v602, 0.0
      %vm655 = vcmp.gt.f32.partialorder %v607, 0.0
      %vm656 = vcmp.gt.f32.partialorder %v610, 0.0
      %vm657 = vcmp.gt.f32.partialorder %v615, 0.0
      %vm658 = vcmp.gt.f32.partialorder %v618, 0.0
      %vm659 = vcmp.gt.f32.partialorder %v623, 0.0
      %vm660 = vcmp.gt.f32.partialorder %v626, 0.0
      %v661 = vmul.f32 %v503, 0.01
      %v662 = vmul.f32 %v506, 0.01
      %v663 = vmul.f32 %v511, 0.01
      %v664 = vmul.f32 %v514, 0.01
      %v665 = vmul.f32 %v519, 0.01
      %v666 = vmul.f32 %v522, 0.01
      %v667 = vmul.f32 %v527, 0.01
      %v668 = vmul.f32 %v530, 0.01
      %v669 = vmul.f32 %v535, 0.01
      %v670 = vmul.f32 %v538, 0.01
      %v671 = vmul.f32 %v543, 0.01
      %v672 = vmul.f32 %v546, 0.01
      %v673 = vmul.f32 %v551, 0.01
      %v674 = vmul.f32 %v554, 0.01
      %v675 = vmul.f32 %v559, 0.01
      %v676 = vmul.f32 %v562, 0.01
      %v677 = vmul.f32 %v567, 0.01
      %v678 = vmul.f32 %v570, 0.01
      %v679 = vmul.f32 %v575, 0.01
      %v680 = vmul.f32 %v578, 0.01
      %v681 = vmul.f32 %v583, 0.01
      %v682 = vmul.f32 %v586, 0.01
      %v683 = vmul.f32 %v591, 0.01
      %v684 = vmul.f32 %v594, 0.01
      %v685 = vmul.f32 %v599, 0.01
      %v686 = vmul.f32 %v602, 0.01
      %v687 = vmul.f32 %v607, 0.01
      %v688 = vmul.f32 %v610, 0.01
      %v689 = vmul.f32 %v615, 0.01
      %v690 = vmul.f32 %v618, 0.01
      %v691 = vmul.f32 %v623, 0.01
      %v692 = vmul.f32 %v626, 0.01
      %v693 = vsel %vm629, %v503, %v661
      %v694 = vsel %vm630, %v506, %v662
      %v695 = vsel %vm631, %v511, %v663
      %v696 = vsel %vm632, %v514, %v664
      %v697 = vsel %vm633, %v519, %v665
      %v698 = vsel %vm634, %v522, %v666
      %v699 = vsel %vm635, %v527, %v667
      %v700 = vsel %vm636, %v530, %v668
      %v701 = vsel %vm637, %v535, %v669
      %v702 = vsel %vm638, %v538, %v670
      %v703 = vsel %vm639, %v543, %v671
      %v704 = vsel %vm640, %v546, %v672
      %v705 = vsel %vm641, %v551, %v673
      %v706 = vsel %vm642, %v554, %v674
      %v707 = vsel %vm643, %v559, %v675
      %v708 = vsel %vm644, %v562, %v676
      %v709 = vsel %vm645, %v567, %v677
      %v710 = vsel %vm646, %v570, %v678
      %v711 = vsel %vm647, %v575, %v679
      %v712 = vsel %vm648, %v578, %v680
      %v713 = vsel %vm649, %v583, %v681
      %v714 = vsel %vm650, %v586, %v682
      %v715 = vsel %vm651, %v591, %v683
      %v716 = vsel %vm652, %v594, %v684
      %v717 = vsel %vm653, %v599, %v685
      %v718 = vsel %vm654, %v602, %v686
      %v719 = vsel %vm655, %v607, %v687
      %v720 = vsel %vm656, %v610, %v688
      %v721 = vsel %vm657, %v615, %v689
      %v722 = vsel %vm658, %v618, %v690
      %v723 = vsel %vm659, %v623, %v691
      %v724 = vsel %vm660, %v626, %v692
      %v725 = vpack.c.bf16 %v694, %v693
      %v726 = vpack.c.bf16 %v696, %v695
      %v727 = vpack.c.bf16 %v698, %v697
      %v728 = vpack.c.bf16 %v700, %v699
      %v729 = vpack.c.bf16 %v702, %v701
      %v730 = vpack.c.bf16 %v704, %v703
      %v731 = vpack.c.bf16 %v706, %v705
      %v732 = vpack.c.bf16 %v708, %v707
      %v733 = vpack.c.bf16 %v710, %v709
      %v734 = vpack.c.bf16 %v712, %v711
      %v735 = vpack.c.bf16 %v714, %v713
      %v736 = vpack.c.bf16 %v716, %v715
      %v737 = vpack.c.bf16 %v718, %v717
      %v738 = vpack.c.bf16 %v720, %v719
      %v739 = vpack.c.bf16 %v722, %v721
      %v740 = vpack.c.bf16 %v724, %v723
      %v741 = vld [vmem:[%s3] sm:$0xf]
      %v742 = vld [vmem:[%s3 + $0x4] sm:$0xf]
      %v743 = vld [vmem:[%s3 + $0x8] sm:$0xf]
      %v744 = vld [vmem:[%s3 + $0xc] sm:$0xf]
      %v745 = vld [vmem:[%s3 + $0x10] sm:$0xf]
      %v746 = vld [vmem:[%s3 + $0x14] sm:$0xf]
      %v747 = vld [vmem:[%s3 + $0x18] sm:$0xf]
      %v748 = vld [vmem:[%s3 + $0x1c] sm:$0xf]
      %v749 = vld [vmem:[%s3 + $0x20] sm:$0xf]
      %v750 = vld [vmem:[%s3 + $0x24] sm:$0xf]
      %v751 = vld [vmem:[%s3 + $0x28] sm:$0xf]
      %v752 = vld [vmem:[%s3 + $0x2c] sm:$0xf]
      %v753 = vld [vmem:[%s3 + $0x30] sm:$0xf]
      %v754 = vld [vmem:[%s3 + $0x34] sm:$0xf]
      %v755 = vld [vmem:[%s3 + $0x38] sm:$0xf]
      %v756 = vld [vmem:[%s3 + $0x3c] sm:$0xf]
      %v757 = vld [vmem:[%s4] sm:$0x1]
      %v759 = vlaneseq
      %v760 = vshrl.u32 %v759, 7
      %v761 = vsub.s32 0, %v760
      %v762 = vrot.slane %v757, %v761
      %v780 = vunpack.c.l.b16 %v741
      %v781 = vunpack.c.l.b16 %v742
      %v782 = vunpack.c.l.b16 %v743
      %v783 = vunpack.c.l.b16 %v744
      %v784 = vunpack.c.l.b16 %v745
      %v785 = vunpack.c.l.b16 %v746
      %v786 = vunpack.c.l.b16 %v747
      %v787 = vunpack.c.l.b16 %v748
      %v788 = vunpack.c.l.b16 %v749
      %v789 = vunpack.c.l.b16 %v750
      %v790 = vunpack.c.l.b16 %v751
      %v791 = vunpack.c.l.b16 %v752
      %v792 = vunpack.c.l.b16 %v753
      %v793 = vunpack.c.l.b16 %v754
      %v794 = vunpack.c.l.b16 %v755
      %v795 = vunpack.c.l.b16 %v756
      %v796 = vpack.c.b16 %v781, %v780
      %v797 = vpack.c.b16 %v783, %v782
      %v798 = vpack.c.b16 %v785, %v784
      %v799 = vpack.c.b16 %v787, %v786
      %v800 = vpack.c.b16 %v789, %v788
      %v801 = vpack.c.b16 %v791, %v790
      %v802 = vpack.c.b16 %v793, %v792
      %v803 = vpack.c.b16 %v795, %v794
      %812 = vmatprep.subr.bf16.mxu0 0
      %813 = vmatpush1.bf16.msra.mxu0 %v796
      %814 = vmatprep.subr.bf16.mxu0 0
      %815 = vmatpush1.bf16.msra.mxu0 %v797
      %816 = vmatprep.subr.bf16.mxu0 0
      %817 = vmatpush1.bf16.msra.mxu0 %v798
      %818 = vmatprep.subr.bf16.mxu0 0
      %819 = vmatpush1.bf16.msra.mxu0 %v799
      %820 = vmatprep.subr.bf16.mxu0 0
      %821 = vmatpush1.bf16.msra.mxu0 %v800
      %822 = vmatprep.subr.bf16.mxu0 0
      %823 = vmatpush1.bf16.msra.mxu0 %v801
      %824 = vmatprep.subr.bf16.mxu0 0
      %825 = vmatpush1.bf16.msra.mxu0 %v802
      %826 = vmatprep.subr.bf16.mxu0 0
      %827 = vmatpush1.bf16.msra.mxu0 %v803
      %828 = vmatprep.subr.bf16.mxu0 0
      %829 = vmatpush1.bf16.msra.mxu0 0
      %830 = vmatprep.subr.bf16.mxu0 0
      %831 = vmatpush1.bf16.msra.mxu0 0
      %832 = vmatprep.subr.bf16.mxu0 0
      %833 = vmatpush1.bf16.msra.mxu0 0
      %834 = vmatprep.subr.bf16.mxu0 0
      %835 = vmatpush1.bf16.msra.mxu0 0
      %836 = vmatprep.subr.bf16.mxu0 0
      %837 = vmatpush1.bf16.msra.mxu0 0
      %838 = vmatprep.subr.bf16.mxu0 0
      %839 = vmatpush1.bf16.msra.mxu0 0
      %840 = vmatprep.subr.bf16.mxu0 0
      %841 = vmatpush1.bf16.msra.mxu0 0
      %842 = vmatprep.subr.bf16.mxu0 0
      %843 = vmatpush1.bf16.msra.mxu0 0
      %844 = vmatprep.mubr.bf16.mxu0 0
      %845 = vmatmul.mubr.bf16.gmra.mrb[0].mxu0 %v725
      %v846 = vpop.f32.mrb[0].mxu0
      %v847 = vadd.f32 %v762, %v846
      %v848 = vpop.f32.mrb[0].mxu0
      %v849 = vpop.f32.mrb[0].mxu0
      %v850 = vadd.f32 %v762, %v849
      %v851 = vpop.f32.mrb[0].mxu0
      %852 = vmatprep.mubr.bf16.mxu0 0
      %853 = vmatmul.mubr.bf16.gmra.mrb[0].mxu0 %v726
      %v854 = vpop.f32.mrb[0].mxu0
      %v855 = vadd.f32 %v762, %v854
      %v856 = vpop.f32.mrb[0].mxu0
      %v857 = vpop.f32.mrb[0].mxu0
      %v858 = vadd.f32 %v762, %v857
      %v859 = vpop.f32.mrb[0].mxu0
      %860 = vmatprep.mubr.bf16.mxu0 0
      %861 = vmatmul.mubr.bf16.gmra.mrb[0].mxu0 %v727
      %v862 = vpop.f32.mrb[0].mxu0
      %v863 = vadd.f32 %v762, %v862
      %v864 = vpop.f32.mrb[0].mxu0
      %v865 = vpop.f32.mrb[0].mxu0
      %v866 = vadd.f32 %v762, %v865
      %v867 = vpop.f32.mrb[0].mxu0
      %868 = vmatprep.mubr.bf16.mxu0 0
      %869 = vmatmul.mubr.bf16.gmra.mrb[0].mxu0 %v728
      %v870 = vpop.f32.mrb[0].mxu0
      %v871 = vadd.f32 %v762, %v870
      %v872 = vpop.f32.mrb[0].mxu0
      %v873 = vpop.f32.mrb[0].mxu0
      %v874 = vadd.f32 %v762, %v873
      %v875 = vpop.f32.mrb[0].mxu0
      %876 = vmatprep.mubr.bf16.mxu0 0
      %877 = vmatmul.mubr.bf16.gmra.mrb[0].mxu0 %v729
      %v878 = vpop.f32.mrb[0].mxu0
      %v879 = vadd.f32 %v762, %v878
      %v880 = vpop.f32.mrb[0].mxu0
      %v881 = vpop.f32.mrb[0].mxu0
      %v882 = vadd.f32 %v762, %v881
      %v883 = vpop.f32.mrb[0].mxu0
      %884 = vmatprep.mubr.bf16.mxu0 0
      %885 = vmatmul.mubr.bf16.gmra.mrb[0].mxu0 %v730
      %v886 = vpop.f32.mrb[0].mxu0
      %v887 = vadd.f32 %v762, %v886
      %v888 = vpop.f32.mrb[0].mxu0
      %v889 = vpop.f32.mrb[0].mxu0
      %v890 = vadd.f32 %v762, %v889
      %v891 = vpop.f32.mrb[0].mxu0
      %892 = vmatprep.mubr.bf16.mxu0 0
      %893 = vmatmul.mubr.bf16.gmra.mrb[0].mxu0 %v731
      %v894 = vpop.f32.mrb[0].mxu0
      %v895 = vadd.f32 %v762, %v894
      %v896 = vpop.f32.mrb[0].mxu0
      %v897 = vpop.f32.mrb[0].mxu0
      %v898 = vadd.f32 %v762, %v897
      %v899 = vpop.f32.mrb[0].mxu0
      %900 = vmatprep.mubr.bf16.mxu0 0
      %901 = vmatmul.mubr.bf16.gmra.mrb[0].mxu0 %v732
      %v902 = vpop.f32.mrb[0].mxu0
      %v903 = vadd.f32 %v762, %v902
      %v904 = vpop.f32.mrb[0].mxu0
      %v905 = vpop.f32.mrb[0].mxu0
      %v906 = vadd.f32 %v762, %v905
      %v907 = vpop.f32.mrb[0].mxu0
      %908 = vmatprep.mubr.bf16.mxu0 0
      %909 = vmatmul.mubr.bf16.gmra.mrb[0].mxu0 %v733
      %v910 = vpop.f32.mrb[0].mxu0
      %v911 = vadd.f32 %v762, %v910
      %v912 = vpop.f32.mrb[0].mxu0
      %v913 = vpop.f32.mrb[0].mxu0
      %v914 = vadd.f32 %v762, %v913
      %v915 = vpop.f32.mrb[0].mxu0
      %916 = vmatprep.mubr.bf16.mxu0 0
      %917 = vmatmul.mubr.bf16.gmra.mrb[0].mxu0 %v734
      %v918 = vpop.f32.mrb[0].mxu0
      %v919 = vadd.f32 %v762, %v918
      %v920 = vpop.f32.mrb[0].mxu0
      %v921 = vpop.f32.mrb[0].mxu0
      %v922 = vadd.f32 %v762, %v921
      %v923 = vpop.f32.mrb[0].mxu0
      %924 = vmatprep.mubr.bf16.mxu0 0
      %925 = vmatmul.mubr.bf16.gmra.mrb[0].mxu0 %v735
      %v926 = vpop.f32.mrb[0].mxu0
      %v927 = vadd.f32 %v762, %v926
      %v928 = vpop.f32.mrb[0].mxu0
      %v929 = vpop.f32.mrb[0].mxu0
      %v930 = vadd.f32 %v762, %v929
      %v931 = vpop.f32.mrb[0].mxu0
      %932 = vmatprep.mubr.bf16.mxu0 0
      %933 = vmatmul.mubr.bf16.gmra.mrb[0].mxu0 %v736
      %v934 = vpop.f32.mrb[0].mxu0
      %v935 = vadd.f32 %v762, %v934
      %v936 = vpop.f32.mrb[0].mxu0
      %v937 = vpop.f32.mrb[0].mxu0
      %v938 = vadd.f32 %v762, %v937
      %v939 = vpop.f32.mrb[0].mxu0
      %940 = vmatprep.mubr.bf16.mxu0 0
      %941 = vmatmul.mubr.bf16.gmra.mrb[0].mxu0 %v737
      %v942 = vpop.f32.mrb[0].mxu0
      %v943 = vadd.f32 %v762, %v942
      %v944 = vpop.f32.mrb[0].mxu0
      %v945 = vpop.f32.mrb[0].mxu0
      %v946 = vadd.f32 %v762, %v945
      %v947 = vpop.f32.mrb[0].mxu0
      %948 = vmatprep.mubr.bf16.mxu0 0
      %949 = vmatmul.mubr.bf16.gmra.mrb[0].mxu0 %v738
      %v950 = vpop.f32.mrb[0].mxu0
      %v951 = vadd.f32 %v762, %v950
      %v952 = vpop.f32.mrb[0].mxu0
      %v953 = vpop.f32.mrb[0].mxu0
      %v954 = vadd.f32 %v762, %v953
      %v955 = vpop.f32.mrb[0].mxu0
      %956 = vmatprep.mubr.bf16.mxu0 0
      %957 = vmatmul.mubr.bf16.gmra.mrb[0].mxu0 %v739
      %v958 = vpop.f32.mrb[0].mxu0
      %v959 = vadd.f32 %v762, %v958
      %v960 = vpop.f32.mrb[0].mxu0
      %v961 = vpop.f32.mrb[0].mxu0
      %v962 = vadd.f32 %v762, %v961
      %v963 = vpop.f32.mrb[0].mxu0
      %964 = vmatprep.mubr.bf16.mxu0 0
      %965 = vmatmul.mubr.bf16.gmra.mrb[0].mxu0 %v740
      %v966 = vpop.f32.mrb[0].mxu0
      %v967 = vadd.f32 %v762, %v966
      %v968 = vpop.f32.mrb[0].mxu0
      %v969 = vpop.f32.mrb[0].mxu0
      %v970 = vadd.f32 %v762, %v969
      %v971 = vpop.f32.mrb[0].mxu0
      %972 = vdwg.mxu0
      %vm973 = vcmp.gt.f32.partialorder %v847, 0.0
      %vm974 = vcmp.gt.f32.partialorder %v850, 0.0
      %vm975 = vcmp.gt.f32.partialorder %v855, 0.0
      %vm976 = vcmp.gt.f32.partialorder %v858, 0.0
      %vm977 = vcmp.gt.f32.partialorder %v863, 0.0
      %vm978 = vcmp.gt.f32.partialorder %v866, 0.0
      %vm979 = vcmp.gt.f32.partialorder %v871, 0.0
      %vm980 = vcmp.gt.f32.partialorder %v874, 0.0
      %vm981 = vcmp.gt.f32.partialorder %v879, 0.0
      %vm982 = vcmp.gt.f32.partialorder %v882, 0.0
      %vm983 = vcmp.gt.f32.partialorder %v887, 0.0
      %vm984 = vcmp.gt.f32.partialorder %v890, 0.0
      %vm985 = vcmp.gt.f32.partialorder %v895, 0.0
      %vm986 = vcmp.gt.f32.partialorder %v898, 0.0
      %vm987 = vcmp.gt.f32.partialorder %v903, 0.0
      %vm988 = vcmp.gt.f32.partialorder %v906, 0.0
      %vm989 = vcmp.gt.f32.partialorder %v911, 0.0
      %vm990 = vcmp.gt.f32.partialorder %v914, 0.0
      %vm991 = vcmp.gt.f32.partialorder %v919, 0.0
      %vm992 = vcmp.gt.f32.partialorder %v922, 0.0
      %vm993 = vcmp.gt.f32.partialorder %v927, 0.0
      %vm994 = vcmp.gt.f32.partialorder %v930, 0.0
      %vm995 = vcmp.gt.f32.partialorder %v935, 0.0
      %vm996 = vcmp.gt.f32.partialorder %v938, 0.0
      %vm997 = vcmp.gt.f32.partialorder %v943, 0.0
      %vm998 = vcmp.gt.f32.partialorder %v946, 0.0
      %vm999 = vcmp.gt.f32.partialorder %v951, 0.0
      %vm1000 = vcmp.gt.f32.partialorder %v954, 0.0
      %vm1001 = vcmp.gt.f32.partialorder %v959, 0.0
      %vm1002 = vcmp.gt.f32.partialorder %v962, 0.0
      %vm1003 = vcmp.gt.f32.partialorder %v967, 0.0
      %vm1004 = vcmp.gt.f32.partialorder %v970, 0.0
      %v1005 = vmul.f32 %v847, 0.01
      %v1006 = vmul.f32 %v850, 0.01
      %v1007 = vmul.f32 %v855, 0.01
      %v1008 = vmul.f32 %v858, 0.01
      %v1009 = vmul.f32 %v863, 0.01
      %v1010 = vmul.f32 %v866, 0.01
      %v1011 = vmul.f32 %v871, 0.01
      %v1012 = vmul.f32 %v874, 0.01
      %v1013 = vmul.f32 %v879, 0.01
      %v1014 = vmul.f32 %v882, 0.01
      %v1015 = vmul.f32 %v887, 0.01
      %v1016 = vmul.f32 %v890, 0.01
      %v1017 = vmul.f32 %v895, 0.01
      %v1018 = vmul.f32 %v898, 0.01
      %v1019 = vmul.f32 %v903, 0.01
      %v1020 = vmul.f32 %v906, 0.01
      %v1021 = vmul.f32 %v911, 0.01
      %v1022 = vmul.f32 %v914, 0.01
      %v1023 = vmul.f32 %v919, 0.01
      %v1024 = vmul.f32 %v922, 0.01
      %v1025 = vmul.f32 %v927, 0.01
      %v1026 = vmul.f32 %v930, 0.01
      %v1027 = vmul.f32 %v935, 0.01
      %v1028 = vmul.f32 %v938, 0.01
      %v1029 = vmul.f32 %v943, 0.01
      %v1030 = vmul.f32 %v946, 0.01
      %v1031 = vmul.f32 %v951, 0.01
      %v1032 = vmul.f32 %v954, 0.01
      %v1033 = vmul.f32 %v959, 0.01
      %v1034 = vmul.f32 %v962, 0.01
      %v1035 = vmul.f32 %v967, 0.01
      %v1036 = vmul.f32 %v970, 0.01
      %v1037 = vsel %vm973, %v847, %v1005
      %v1038 = vsel %vm974, %v850, %v1006
      %v1039 = vsel %vm975, %v855, %v1007
      %v1040 = vsel %vm976, %v858, %v1008
      %v1041 = vsel %vm977, %v863, %v1009
      %v1042 = vsel %vm978, %v866, %v1010
      %v1043 = vsel %vm979, %v871, %v1011
      %v1044 = vsel %vm980, %v874, %v1012
      %v1045 = vsel %vm981, %v879, %v1013
      %v1046 = vsel %vm982, %v882, %v1014
      %v1047 = vsel %vm983, %v887, %v1015
      %v1048 = vsel %vm984, %v890, %v1016
      %v1049 = vsel %vm985, %v895, %v1017
      %v1050 = vsel %vm986, %v898, %v1018
      %v1051 = vsel %vm987, %v903, %v1019
      %v1052 = vsel %vm988, %v906, %v1020
      %v1053 = vsel %vm989, %v911, %v1021
      %v1054 = vsel %vm990, %v914, %v1022
      %v1055 = vsel %vm991, %v919, %v1023
      %v1056 = vsel %vm992, %v922, %v1024
      %v1057 = vsel %vm993, %v927, %v1025
      %v1058 = vsel %vm994, %v930, %v1026
      %v1059 = vsel %vm995, %v935, %v1027
      %v1060 = vsel %vm996, %v938, %v1028
      %v1061 = vsel %vm997, %v943, %v1029
      %v1062 = vsel %vm998, %v946, %v1030
      %v1063 = vsel %vm999, %v951, %v1031
      %v1064 = vsel %vm1000, %v954, %v1032
      %v1065 = vsel %vm1001, %v959, %v1033
      %v1066 = vsel %vm1002, %v962, %v1034
      %v1067 = vsel %vm1003, %v967, %v1035
      %v1068 = vsel %vm1004, %v970, %v1036
      %v1069 = vpack.c.bf16 %v1038, %v1037
      %v1070 = vpack.c.bf16 %v1040, %v1039
      %v1071 = vpack.c.bf16 %v1042, %v1041
      %v1072 = vpack.c.bf16 %v1044, %v1043
      %v1073 = vpack.c.bf16 %v1046, %v1045
      %v1074 = vpack.c.bf16 %v1048, %v1047
      %v1075 = vpack.c.bf16 %v1050, %v1049
      %v1076 = vpack.c.bf16 %v1052, %v1051
      %v1077 = vpack.c.bf16 %v1054, %v1053
      %v1078 = vpack.c.bf16 %v1056, %v1055
      %v1079 = vpack.c.bf16 %v1058, %v1057
      %v1080 = vpack.c.bf16 %v1060, %v1059
      %v1081 = vpack.c.bf16 %v1062, %v1061
      %v1082 = vpack.c.bf16 %v1064, %v1063
      %v1083 = vpack.c.bf16 %v1066, %v1065
      %v1084 = vpack.c.bf16 %v1068, %v1067
      %v1085 = vld [vmem:[%s5] sm:$0xf]
      %v1086 = vld [vmem:[%s5 + $0x4] sm:$0xf]
      %v1087 = vld [vmem:[%s5 + $0x8] sm:$0xf]
      %v1088 = vld [vmem:[%s5 + $0xc] sm:$0xf]
      %v1089 = vld [vmem:[%s5 + $0x10] sm:$0xf]
      %v1090 = vld [vmem:[%s5 + $0x14] sm:$0xf]
      %v1091 = vld [vmem:[%s5 + $0x18] sm:$0xf]
      %v1092 = vld [vmem:[%s5 + $0x1c] sm:$0xf]
      %v1093 = vld [vmem:[%s5 + $0x20] sm:$0xf]
      %v1094 = vld [vmem:[%s5 + $0x24] sm:$0xf]
      %v1095 = vld [vmem:[%s5 + $0x28] sm:$0xf]
      %v1096 = vld [vmem:[%s5 + $0x2c] sm:$0xf]
      %v1097 = vld [vmem:[%s5 + $0x30] sm:$0xf]
      %v1098 = vld [vmem:[%s5 + $0x34] sm:$0xf]
      %v1099 = vld [vmem:[%s5 + $0x38] sm:$0xf]
      %v1100 = vld [vmem:[%s5 + $0x3c] sm:$0xf]
      %v1101 = vld [vmem:[%s6] sm:$0x1]
      %v1103 = vlaneseq
      %v1104 = vshrl.u32 %v1103, 7
      %v1105 = vsub.s32 0, %v1104
      %v1106 = vrot.slane %v1101, %v1105
      %v1124 = vunpack.c.l.b16 %v1085
      %v1125 = vunpack.c.l.b16 %v1086
      %v1126 = vunpack.c.l.b16 %v1087
      %v1127 = vunpack.c.l.b16 %v1088
      %v1128 = vunpack.c.l.b16 %v1089
      %v1129 = vunpack.c.l.b16 %v1090
      %v1130 = vunpack.c.l.b16 %v1091
      %v1131 = vunpack.c.l.b16 %v1092
      %v1132 = vunpack.c.l.b16 %v1093
      %v1133 = vunpack.c.l.b16 %v1094
      %v1134 = vunpack.c.l.b16 %v1095
      %v1135 = vunpack.c.l.b16 %v1096
      %v1136 = vunpack.c.l.b16 %v1097
      %v1137 = vunpack.c.l.b16 %v1098
      %v1138 = vunpack.c.l.b16 %v1099
      %v1139 = vunpack.c.l.b16 %v1100
      %v1140 = vpack.c.b16 %v1125, %v1124
      %v1141 = vpack.c.b16 %v1127, %v1126
      %v1142 = vpack.c.b16 %v1129, %v1128
      %v1143 = vpack.c.b16 %v1131, %v1130
      %v1144 = vpack.c.b16 %v1133, %v1132
      %v1145 = vpack.c.b16 %v1135, %v1134
      %v1146 = vpack.c.b16 %v1137, %v1136
      %v1147 = vpack.c.b16 %v1139, %v1138
      %1156 = vmatprep.subr.bf16.mxu0 0
      %1157 = vmatpush1.bf16.msra.mxu0 %v1140
      %1158 = vmatprep.subr.bf16.mxu0 0
      %1159 = vmatpush1.bf16.msra.mxu0 %v1141
      %1160 = vmatprep.subr.bf16.mxu0 0
      %1161 = vmatpush1.bf16.msra.mxu0 %v1142
      %1162 = vmatprep.subr.bf16.mxu0 0
      %1163 = vmatpush1.bf16.msra.mxu0 %v1143
      %1164 = vmatprep.subr.bf16.mxu0 0
      %1165 = vmatpush1.bf16.msra.mxu0 %v1144
      %1166 = vmatprep.subr.bf16.mxu0 0
      %1167 = vmatpush1.bf16.msra.mxu0 %v1145
      %1168 = vmatprep.subr.bf16.mxu0 0
      %1169 = vmatpush1.bf16.msra.mxu0 %v1146
      %1170 = vmatprep.subr.bf16.mxu0 0
      %1171 = vmatpush1.bf16.msra.mxu0 %v1147
      %1172 = vmatprep.subr.bf16.mxu0 0
      %1173 = vmatpush1.bf16.msra.mxu0 0
      %1174 = vmatprep.subr.bf16.mxu0 0
      %1175 = vmatpush1.bf16.msra.mxu0 0
      %1176 = vmatprep.subr.bf16.mxu0 0
      %1177 = vmatpush1.bf16.msra.mxu0 0
      %1178 = vmatprep.subr.bf16.mxu0 0
      %1179 = vmatpush1.bf16.msra.mxu0 0
      %1180 = vmatprep.subr.bf16.mxu0 0
      %1181 = vmatpush1.bf16.msra.mxu0 0
      %1182 = vmatprep.subr.bf16.mxu0 0
      %1183 = vmatpush1.bf16.msra.mxu0 0
      %1184 = vmatprep.subr.bf16.mxu0 0
      %1185 = vmatpush1.bf16.msra.mxu0 0
      %1186 = vmatprep.subr.bf16.mxu0 0
      %1187 = vmatpush1.bf16.msra.mxu0 0
      %1188 = vmatprep.mubr.bf16.mxu0 0
      %1189 = vmatmul.mubr.bf16.gmra.mrb[0].mxu0 %v1069
      %v1190 = vpop.f32.mrb[0].mxu0
      %v1191 = vadd.f32 %v1106, %v1190
      %v1192 = vpop.f32.mrb[0].mxu0
      %v1193 = vpop.f32.mrb[0].mxu0
      %v1194 = vadd.f32 %v1106, %v1193
      %v1195 = vpop.f32.mrb[0].mxu0
      %1196 = vmatprep.mubr.bf16.mxu0 0
      %1197 = vmatmul.mubr.bf16.gmra.mrb[0].mxu0 %v1070
      %v1198 = vpop.f32.mrb[0].mxu0
      %v1199 = vadd.f32 %v1106, %v1198
      %v1200 = vpop.f32.mrb[0].mxu0
      %v1201 = vpop.f32.mrb[0].mxu0
      %v1202 = vadd.f32 %v1106, %v1201
      %v1203 = vpop.f32.mrb[0].mxu0
      %1204 = vmatprep.mubr.bf16.mxu0 0
      %1205 = vmatmul.mubr.bf16.gmra.mrb[0].mxu0 %v1071
      %v1206 = vpop.f32.mrb[0].mxu0
      %v1207 = vadd.f32 %v1106, %v1206
      %v1208 = vpop.f32.mrb[0].mxu0
      %v1209 = vpop.f32.mrb[0].mxu0
      %v1210 = vadd.f32 %v1106, %v1209
      %v1211 = vpop.f32.mrb[0].mxu0
      %1212 = vmatprep.mubr.bf16.mxu0 0
      %1213 = vmatmul.mubr.bf16.gmra.mrb[0].mxu0 %v1072
      %v1214 = vpop.f32.mrb[0].mxu0
      %v1215 = vadd.f32 %v1106, %v1214
      %v1216 = vpop.f32.mrb[0].mxu0
      %v1217 = vpop.f32.mrb[0].mxu0
      %v1218 = vadd.f32 %v1106, %v1217
      %v1219 = vpop.f32.mrb[0].mxu0
      %1220 = vmatprep.mubr.bf16.mxu0 0
      %1221 = vmatmul.mubr.bf16.gmra.mrb[0].mxu0 %v1073
      %v1222 = vpop.f32.mrb[0].mxu0
      %v1223 = vadd.f32 %v1106, %v1222
      %v1224 = vpop.f32.mrb[0].mxu0
      %v1225 = vpop.f32.mrb[0].mxu0
      %v1226 = vadd.f32 %v1106, %v1225
      %v1227 = vpop.f32.mrb[0].mxu0
      %1228 = vmatprep.mubr.bf16.mxu0 0
      %1229 = vmatmul.mubr.bf16.gmra.mrb[0].mxu0 %v1074
      %v1230 = vpop.f32.mrb[0].mxu0
      %v1231 = vadd.f32 %v1106, %v1230
      %v1232 = vpop.f32.mrb[0].mxu0
      %v1233 = vpop.f32.mrb[0].mxu0
      %v1234 = vadd.f32 %v1106, %v1233
      %v1235 = vpop.f32.mrb[0].mxu0
      %1236 = vmatprep.mubr.bf16.mxu0 0
      %1237 = vmatmul.mubr.bf16.gmra.mrb[0].mxu0 %v1075
      %v1238 = vpop.f32.mrb[0].mxu0
      %v1239 = vadd.f32 %v1106, %v1238
      %v1240 = vpop.f32.mrb[0].mxu0
      %v1241 = vpop.f32.mrb[0].mxu0
      %v1242 = vadd.f32 %v1106, %v1241
      %v1243 = vpop.f32.mrb[0].mxu0
      %1244 = vmatprep.mubr.bf16.mxu0 0
      %1245 = vmatmul.mubr.bf16.gmra.mrb[0].mxu0 %v1076
      %v1246 = vpop.f32.mrb[0].mxu0
      %v1247 = vadd.f32 %v1106, %v1246
      %v1248 = vpop.f32.mrb[0].mxu0
      %v1249 = vpop.f32.mrb[0].mxu0
      %v1250 = vadd.f32 %v1106, %v1249
      %v1251 = vpop.f32.mrb[0].mxu0
      %1252 = vmatprep.mubr.bf16.mxu0 0
      %1253 = vmatmul.mubr.bf16.gmra.mrb[0].mxu0 %v1077
      %v1254 = vpop.f32.mrb[0].mxu0
      %v1255 = vadd.f32 %v1106, %v1254
      %v1256 = vpop.f32.mrb[0].mxu0
      %v1257 = vpop.f32.mrb[0].mxu0
      %v1258 = vadd.f32 %v1106, %v1257
      %v1259 = vpop.f32.mrb[0].mxu0
      %1260 = vmatprep.mubr.bf16.mxu0 0
      %1261 = vmatmul.mubr.bf16.gmra.mrb[0].mxu0 %v1078
      %v1262 = vpop.f32.mrb[0].mxu0
      %v1263 = vadd.f32 %v1106, %v1262
      %v1264 = vpop.f32.mrb[0].mxu0
      %v1265 = vpop.f32.mrb[0].mxu0
      %v1266 = vadd.f32 %v1106, %v1265
      %v1267 = vpop.f32.mrb[0].mxu0
      %1268 = vmatprep.mubr.bf16.mxu0 0
      %1269 = vmatmul.mubr.bf16.gmra.mrb[0].mxu0 %v1079
      %v1270 = vpop.f32.mrb[0].mxu0
      %v1271 = vadd.f32 %v1106, %v1270
      %v1272 = vpop.f32.mrb[0].mxu0
      %v1273 = vpop.f32.mrb[0].mxu0
      %v1274 = vadd.f32 %v1106, %v1273
      %v1275 = vpop.f32.mrb[0].mxu0
      %1276 = vmatprep.mubr.bf16.mxu0 0
      %1277 = vmatmul.mubr.bf16.gmra.mrb[0].mxu0 %v1080
      %v1278 = vpop.f32.mrb[0].mxu0
      %v1279 = vadd.f32 %v1106, %v1278
      %v1280 = vpop.f32.mrb[0].mxu0
      %v1281 = vpop.f32.mrb[0].mxu0
      %v1282 = vadd.f32 %v1106, %v1281
      %v1283 = vpop.f32.mrb[0].mxu0
      %1284 = vmatprep.mubr.bf16.mxu0 0
      %1285 = vmatmul.mubr.bf16.gmra.mrb[0].mxu0 %v1081
      %v1286 = vpop.f32.mrb[0].mxu0
      %v1287 = vadd.f32 %v1106, %v1286
      %v1288 = vpop.f32.mrb[0].mxu0
      %v1289 = vpop.f32.mrb[0].mxu0
      %v1290 = vadd.f32 %v1106, %v1289
      %v1291 = vpop.f32.mrb[0].mxu0
      %1292 = vmatprep.mubr.bf16.mxu0 0
      %1293 = vmatmul.mubr.bf16.gmra.mrb[0].mxu0 %v1082
      %v1294 = vpop.f32.mrb[0].mxu0
      %v1295 = vadd.f32 %v1106, %v1294
      %v1296 = vpop.f32.mrb[0].mxu0
      %v1297 = vpop.f32.mrb[0].mxu0
      %v1298 = vadd.f32 %v1106, %v1297
      %v1299 = vpop.f32.mrb[0].mxu0
      %1300 = vmatprep.mubr.bf16.mxu0 0
      %1301 = vmatmul.mubr.bf16.gmra.mrb[0].mxu0 %v1083
      %v1302 = vpop.f32.mrb[0].mxu0
      %v1303 = vadd.f32 %v1106, %v1302
      %v1304 = vpop.f32.mrb[0].mxu0
      %v1305 = vpop.f32.mrb[0].mxu0
      %v1306 = vadd.f32 %v1106, %v1305
      %v1307 = vpop.f32.mrb[0].mxu0
      %1308 = vmatprep.mubr.bf16.mxu0 0
      %1309 = vmatmul.mubr.bf16.gmra.mrb[0].mxu0 %v1084
      %v1310 = vpop.f32.mrb[0].mxu0
      %v1311 = vadd.f32 %v1106, %v1310
      %v1312 = vpop.f32.mrb[0].mxu0
      %v1313 = vpop.f32.mrb[0].mxu0
      %v1314 = vadd.f32 %v1106, %v1313
      %v1315 = vpop.f32.mrb[0].mxu0
      %1316 = vdwg.mxu0
      %v1317 = vld [vmem:[%s323] sm:$0xff]
      %v1318 = vld [vmem:[%s323 + $0x8] sm:$0xff]
      %v1319 = vld [vmem:[%s323 + $0x10] sm:$0xff]
      %v1320 = vld [vmem:[%s323 + $0x18] sm:$0xff]
      %v1321 = vld [vmem:[%s323 + $0x20] sm:$0xff]
      %v1322 = vld [vmem:[%s323 + $0x28] sm:$0xff]
      %v1323 = vld [vmem:[%s323 + $0x30] sm:$0xff]
      %v1324 = vld [vmem:[%s323 + $0x38] sm:$0xff]
      %v1325 = vld [vmem:[%s323 + $0x40] sm:$0xff]
      %v1326 = vld [vmem:[%s323 + $0x48] sm:$0xff]
      %v1327 = vld [vmem:[%s323 + $0x50] sm:$0xff]
      %v1328 = vld [vmem:[%s323 + $0x58] sm:$0xff]
      %v1329 = vld [vmem:[%s323 + $0x60] sm:$0xff]
      %v1330 = vld [vmem:[%s323 + $0x68] sm:$0xff]
      %v1331 = vld [vmem:[%s323 + $0x70] sm:$0xff]
      %v1332 = vld [vmem:[%s323 + $0x78] sm:$0xff]
      %v1333 = vld [vmem:[%s323 + $0x80] sm:$0xff]
      %v1334 = vld [vmem:[%s323 + $0x88] sm:$0xff]
      %v1335 = vld [vmem:[%s323 + $0x90] sm:$0xff]
      %v1336 = vld [vmem:[%s323 + $0x98] sm:$0xff]
      %v1337 = vld [vmem:[%s323 + $0xa0] sm:$0xff]
      %v1338 = vld [vmem:[%s323 + $0xa8] sm:$0xff]
      %v1339 = vld [vmem:[%s323 + $0xb0] sm:$0xff]
      %v1340 = vld [vmem:[%s323 + $0xb8] sm:$0xff]
      %v1341 = vld [vmem:[%s323 + $0xc0] sm:$0xff]
      %v1342 = vld [vmem:[%s323 + $0xc8] sm:$0xff]
      %v1343 = vld [vmem:[%s323 + $0xd0] sm:$0xff]
      %v1344 = vld [vmem:[%s323 + $0xd8] sm:$0xff]
      %v1345 = vld [vmem:[%s323 + $0xe0] sm:$0xff]
      %v1346 = vld [vmem:[%s323 + $0xe8] sm:$0xff]
      %v1347 = vld [vmem:[%s323 + $0xf0] sm:$0xff]
      %v1348 = vld [vmem:[%s323 + $0xf8] sm:$0xff]
      %v1349 = vmul.f32 %v1191, 0.5
      %v1350 = vmul.f32 %v1194, 0.5
      %v1351 = vmul.f32 %v1199, 0.5
      %v1352 = vmul.f32 %v1202, 0.5
      %v1353 = vmul.f32 %v1207, 0.5
      %v1354 = vmul.f32 %v1210, 0.5
      %v1355 = vmul.f32 %v1215, 0.5
      %v1356 = vmul.f32 %v1218, 0.5
      %v1357 = vmul.f32 %v1223, 0.5
      %v1358 = vmul.f32 %v1226, 0.5
      %v1359 = vmul.f32 %v1231, 0.5
      %v1360 = vmul.f32 %v1234, 0.5
      %v1361 = vmul.f32 %v1239, 0.5
      %v1362 = vmul.f32 %v1242, 0.5
      %v1363 = vmul.f32 %v1247, 0.5
      %v1364 = vmul.f32 %v1250, 0.5
      %v1365 = vmul.f32 %v1255, 0.5
      %v1366 = vmul.f32 %v1258, 0.5
      %v1367 = vmul.f32 %v1263, 0.5
      %v1368 = vmul.f32 %v1266, 0.5
      %v1369 = vmul.f32 %v1271, 0.5
      %v1370 = vmul.f32 %v1274, 0.5
      %v1371 = vmul.f32 %v1279, 0.5
      %v1372 = vmul.f32 %v1282, 0.5
      %v1373 = vmul.f32 %v1287, 0.5
      %v1374 = vmul.f32 %v1290, 0.5
      %v1375 = vmul.f32 %v1295, 0.5
      %v1376 = vmul.f32 %v1298, 0.5
      %v1377 = vmul.f32 %v1303, 0.5
      %v1378 = vmul.f32 %v1306, 0.5
      %v1379 = vmul.f32 %v1311, 0.5
      %v1380 = vmul.f32 %v1314, 0.5
      %v1381 = vsub.f32 -0.9189385, %v1349
      %v1382 = vsub.f32 -0.9189385, %v1350
      %v1383 = vsub.f32 -0.9189385, %v1351
      %v1384 = vsub.f32 -0.9189385, %v1352
      %v1385 = vsub.f32 -0.9189385, %v1353
      %v1386 = vsub.f32 -0.9189385, %v1354
      %v1387 = vsub.f32 -0.9189385, %v1355
      %v1388 = vsub.f32 -0.9189385, %v1356
      %v1389 = vsub.f32 -0.9189385, %v1357
      %v1390 = vsub.f32 -0.9189385, %v1358
      %v1391 = vsub.f32 -0.9189385, %v1359
      %v1392 = vsub.f32 -0.9189385, %v1360
      %v1393 = vsub.f32 -0.9189385, %v1361
      %v1394 = vsub.f32 -0.9189385, %v1362
      %v1395 = vsub.f32 -0.9189385, %v1363
      %v1396 = vsub.f32 -0.9189385, %v1364
      %v1397 = vsub.f32 -0.9189385, %v1365
      %v1398 = vsub.f32 -0.9189385, %v1366
      %v1399 = vsub.f32 -0.9189385, %v1367
      %v1400 = vsub.f32 -0.9189385, %v1368
      %v1401 = vsub.f32 -0.9189385, %v1369
      %v1402 = vsub.f32 -0.9189385, %v1370
      %v1403 = vsub.f32 -0.9189385, %v1371
      %v1404 = vsub.f32 -0.9189385, %v1372
      %v1405 = vsub.f32 -0.9189385, %v1373
      %v1406 = vsub.f32 -0.9189385, %v1374
      %v1407 = vsub.f32 -0.9189385, %v1375
      %v1408 = vsub.f32 -0.9189385, %v1376
      %v1409 = vsub.f32 -0.9189385, %v1377
      %v1410 = vsub.f32 -0.9189385, %v1378
      %v1411 = vsub.f32 -0.9189385, %v1379
      %v1412 = vsub.f32 -0.9189385, %v1380
      %v1413 = vmul.f32 %v1317, 0.5
      %v1414 = vmul.f32 %v1318, 0.5
      %v1415 = vmul.f32 %v1319, 0.5
      %v1416 = vmul.f32 %v1320, 0.5
      %v1417 = vmul.f32 %v1321, 0.5
      %v1418 = vmul.f32 %v1322, 0.5
      %v1419 = vmul.f32 %v1323, 0.5
      %v1420 = vmul.f32 %v1324, 0.5
      %v1421 = vmul.f32 %v1325, 0.5
      %v1422 = vmul.f32 %v1326, 0.5
      %v1423 = vmul.f32 %v1327, 0.5
      %v1424 = vmul.f32 %v1328, 0.5
      %v1425 = vmul.f32 %v1329, 0.5
      %v1426 = vmul.f32 %v1330, 0.5
      %v1427 = vmul.f32 %v1331, 0.5
      %v1428 = vmul.f32 %v1332, 0.5
      %v1429 = vmul.f32 %v1333, 0.5
      %v1430 = vmul.f32 %v1334, 0.5
      %v1431 = vmul.f32 %v1335, 0.5
      %v1432 = vmul.f32 %v1336, 0.5
      %v1433 = vmul.f32 %v1337, 0.5
      %v1434 = vmul.f32 %v1338, 0.5
      %v1435 = vmul.f32 %v1339, 0.5
      %v1436 = vmul.f32 %v1340, 0.5
      %v1437 = vmul.f32 %v1341, 0.5
      %v1438 = vmul.f32 %v1342, 0.5
      %v1439 = vmul.f32 %v1343, 0.5
      %v1440 = vmul.f32 %v1344, 0.5
      %v1441 = vmul.f32 %v1345, 0.5
      %v1442 = vmul.f32 %v1346, 0.5
      %v1443 = vmul.f32 %v1347, 0.5
      %v1444 = vmul.f32 %v1348, 0.5
      %v1445 = vmul.f32 %v1413, %v1317
      %v1446 = vmul.f32 %v1414, %v1318
      %v1447 = vmul.f32 %v1415, %v1319
      %v1448 = vmul.f32 %v1416, %v1320
      %v1449 = vmul.f32 %v1417, %v1321
      %v1450 = vmul.f32 %v1418, %v1322
      %v1451 = vmul.f32 %v1419, %v1323
      %v1452 = vmul.f32 %v1420, %v1324
      %v1453 = vmul.f32 %v1421, %v1325
      %v1454 = vmul.f32 %v1422, %v1326
      %v1455 = vmul.f32 %v1423, %v1327
      %v1456 = vmul.f32 %v1424, %v1328
      %v1457 = vmul.f32 %v1425, %v1329
      %v1458 = vmul.f32 %v1426, %v1330
      %v1459 = vmul.f32 %v1427, %v1331
      %v1460 = vmul.f32 %v1428, %v1332
      %v1461 = vmul.f32 %v1429, %v1333
      %v1462 = vmul.f32 %v1430, %v1334
      %v1463 = vmul.f32 %v1431, %v1335
      %v1464 = vmul.f32 %v1432, %v1336
      %v1465 = vmul.f32 %v1433, %v1337
      %v1466 = vmul.f32 %v1434, %v1338
      %v1467 = vmul.f32 %v1435, %v1339
      %v1468 = vmul.f32 %v1436, %v1340
      %v1469 = vmul.f32 %v1437, %v1341
      %v1470 = vmul.f32 %v1438, %v1342
      %v1471 = vmul.f32 %v1439, %v1343
      %v1472 = vmul.f32 %v1440, %v1344
      %v1473 = vmul.f32 %v1441, %v1345
      %v1474 = vmul.f32 %v1442, %v1346
      %v1475 = vmul.f32 %v1443, %v1347
      %v1476 = vmul.f32 %v1444, %v1348
      %v1477 = vsub.f32 %v1381, %v1445
      %v1478 = vsub.f32 %v1382, %v1446
      %v1479 = vsub.f32 %v1383, %v1447
      %v1480 = vsub.f32 %v1384, %v1448
      %v1481 = vsub.f32 %v1385, %v1449
      %v1482 = vsub.f32 %v1386, %v1450
      %v1483 = vsub.f32 %v1387, %v1451
      %v1484 = vsub.f32 %v1388, %v1452
      %v1485 = vsub.f32 %v1389, %v1453
      %v1486 = vsub.f32 %v1390, %v1454
      %v1487 = vsub.f32 %v1391, %v1455
      %v1488 = vsub.f32 %v1392, %v1456
      %v1489 = vsub.f32 %v1393, %v1457
      %v1490 = vsub.f32 %v1394, %v1458
      %v1491 = vsub.f32 %v1395, %v1459
      %v1492 = vsub.f32 %v1396, %v1460
      %v1493 = vsub.f32 %v1397, %v1461
      %v1494 = vsub.f32 %v1398, %v1462
      %v1495 = vsub.f32 %v1399, %v1463
      %v1496 = vsub.f32 %v1400, %v1464
      %v1497 = vsub.f32 %v1401, %v1465
      %v1498 = vsub.f32 %v1402, %v1466
      %v1499 = vsub.f32 %v1403, %v1467
      %v1500 = vsub.f32 %v1404, %v1468
      %v1501 = vsub.f32 %v1405, %v1469
      %v1502 = vsub.f32 %v1406, %v1470
      %v1503 = vsub.f32 %v1407, %v1471
      %v1504 = vsub.f32 %v1408, %v1472
      %v1505 = vsub.f32 %v1409, %v1473
      %v1506 = vsub.f32 %v1410, %v1474
      %v1507 = vsub.f32 %v1411, %v1475
      %v1508 = vsub.f32 %v1412, %v1476
      %1509 = vst.msk [vmem:[%s329] sm:$0xff] %vm419, %v1477
      %1510 = vst.msk [vmem:[%s329 + $0x8] sm:$0xff] %vm419, %v1478
      %1511 = vst.msk [vmem:[%s329 + $0x10] sm:$0xff] %vm419, %v1479
      %1512 = vst.msk [vmem:[%s329 + $0x18] sm:$0xff] %vm419, %v1480
      %1513 = vst.msk [vmem:[%s329 + $0x20] sm:$0xff] %vm419, %v1481
      %1514 = vst.msk [vmem:[%s329 + $0x28] sm:$0xff] %vm419, %v1482
      %1515 = vst.msk [vmem:[%s329 + $0x30] sm:$0xff] %vm419, %v1483
      %1516 = vst.msk [vmem:[%s329 + $0x38] sm:$0xff] %vm419, %v1484
      %1517 = vst.msk [vmem:[%s329 + $0x40] sm:$0xff] %vm419, %v1485
      %1518 = vst.msk [vmem:[%s329 + $0x48] sm:$0xff] %vm419, %v1486
      %1519 = vst.msk [vmem:[%s329 + $0x50] sm:$0xff] %vm419, %v1487
      %1520 = vst.msk [vmem:[%s329 + $0x58] sm:$0xff] %vm419, %v1488
      %1521 = vst.msk [vmem:[%s329 + $0x60] sm:$0xff] %vm419, %v1489
      %1522 = vst.msk [vmem:[%s329 + $0x68] sm:$0xff] %vm419, %v1490
      %1523 = vst.msk [vmem:[%s329 + $0x70] sm:$0xff] %vm419, %v1491
      %1524 = vst.msk [vmem:[%s329 + $0x78] sm:$0xff] %vm419, %v1492
      %1525 = vst.msk [vmem:[%s329 + $0x80] sm:$0xff] %vm419, %v1493
      %1526 = vst.msk [vmem:[%s329 + $0x88] sm:$0xff] %vm419, %v1494
      %1527 = vst.msk [vmem:[%s329 + $0x90] sm:$0xff] %vm419, %v1495
      %1528 = vst.msk [vmem:[%s329 + $0x98] sm:$0xff] %vm419, %v1496
      %1529 = vst.msk [vmem:[%s329 + $0xa0] sm:$0xff] %vm419, %v1497
      %1530 = vst.msk [vmem:[%s329 + $0xa8] sm:$0xff] %vm419, %v1498
      %1531 = vst.msk [vmem:[%s329 + $0xb0] sm:$0xff] %vm419, %v1499
      %1532 = vst.msk [vmem:[%s329 + $0xb8] sm:$0xff] %vm419, %v1500
      %1533 = vst.msk [vmem:[%s329 + $0xc0] sm:$0xff] %vm419, %v1501
      %1534 = vst.msk [vmem:[%s329 + $0xc8] sm:$0xff] %vm419, %v1502
      %1535 = vst.msk [vmem:[%s329 + $0xd0] sm:$0xff] %vm419, %v1503
      %1536 = vst.msk [vmem:[%s329 + $0xd8] sm:$0xff] %vm419, %v1504
      %1537 = vst.msk [vmem:[%s329 + $0xe0] sm:$0xff] %vm419, %v1505
      %1538 = vst.msk [vmem:[%s329 + $0xe8] sm:$0xff] %vm419, %v1506
      %1539 = vst.msk [vmem:[%s329 + $0xf0] sm:$0xff] %vm419, %v1507
      %1540 = vst.msk [vmem:[%s329 + $0xf8] sm:$0xff] %vm419, %v1508
      %s1541 = smul.u32 32, %s19
      %p1542 = scmp.lt.s32.totalorder %s1541, 63
      %s1543 = scalar_select %p1542, %s1541, 63
      %s1544 = smul.addr %s1543, 8
      %s1545 = scalar_lea.vmem %s8, %s1544
      // Predicated region
      $region53: #{tpu_custom_call.1} parent=51 // pred_check
        %p1546 = pneg %p215
      $region54: #{tpu_custom_call.1} parent=51 // pred_check_branch
        %1548 = sbr.rel (%p1546) target = $region56
      $region55: #{tpu_custom_call.1} parent=51 // pred_region
        %s1549 = smul.u32 32, %s19
      $region56: #{tpu_custom_call.1} parent=51 // pred_fallthru
        _
    $region52: #{tpu_custom_call.1} parent=5 // pred_fallthru
      _
    %p1550 = scmp.le.s32.totalorder 2, %s14
    // Predicated region
    $region57: #{tpu_custom_call.1} parent=5 // pred_check
      %p1551 = pneg %p1550
    $region58: #{tpu_custom_call.1} parent=5 // pred_check_branch
      %1553 = sbr.rel (%p1551) target = $region60
    $region59: #{tpu_custom_call.1} parent=5 // pred_region
      %s1554 = ssub.s32 %s14, 2
      // Predicated region
      $region61: #{tpu_custom_call.1} parent=59 // pred_check
        %p1555 = pneg %p221
      $region62: #{tpu_custom_call.1} parent=59 // pred_check_branch
        %1557 = sbr.rel (%p1555) target = $region64
      $region63: #{tpu_custom_call.1} parent=59 // pred_region
        %s1558 = smul.u32 32, %s20
        %p1559 = scmp.lt.s32.totalorder %s1558, 63
        %s1560 = scalar_select %p1559, %s1558, 63
        %s1561 = smul.addr %s1560, 8
        %s1562 = scalar_lea.vmem %s8, %s1561
      $region64: #{tpu_custom_call.1} parent=59 // pred_fallthru
        _
    $region60: #{tpu_custom_call.1} parent=5 // pred_fallthru
      _
  $region6: #{tpu_custom_call.1} parent=0 // loop_footer
    %s18 = sadd.s32 1, %s14
  $region7: #{tpu_custom_call.1} parent=0 // loop_footer_branch
    %13 = sbr.rel target = $region3
  $region8: #{tpu_custom_call.1} parent=0 // loop_exit
    _

</llo_original>
